<compile_context>
chip_gen: v7x
topology: tpu7x:2x2x1
jax: 0.10.0
libtpu: 0.0.40
codegen_flags: <defaults>
</compile_context>

<pallas_src>
import jax
import jax.numpy as jnp
from jax import lax
from jax.experimental import pallas as pl
from jax.experimental.pallas import tpu as pltpu


def mlp_kernel(x_ref, w1_ref, b1_ref, w2_ref, b2_ref, w3_ref, b3_ref, o_ref):
    # x_ref : (tile_b, 5)  f32  -- natural row-major layout, straight from HBM
    # w*    : (out, in)    f32  -- resident in VMEM (constant block index)
    # b*    : (out, 1)     f32  -- lane-broadcast adds
    # o_ref : (1, tile_b)  f32  -- lane-dense output block
    x = x_ref[...]

    # fc1 + ReLU:  (16, 5) @ (tile_b, 5)^T -> (16, tile_b)   (feature-major)
    h1 = lax.dot_general(
        w1_ref[...], x, (((1,), (1,)), ((), ())),
        preferred_element_type=jnp.float32,
    )
    h1 = jnp.maximum(h1 + b1_ref[...], 0.0)

    # fc2 + ReLU: (16, 16) @ (16, tile_b) -> (16, tile_b)
    h2 = jnp.dot(w2_ref[...], h1, preferred_element_type=jnp.float32)
    h2 = jnp.maximum(h2 + b2_ref[...], 0.0)

    # fc3 (no activation): (1, 16) @ (16, tile_b) -> (1, tile_b), lane-dense store
    o_ref[...] = (
        jnp.dot(w3_ref[...], h2, preferred_element_type=jnp.float32) + b3_ref[...]
    )


def netdiff_forward(x, params, *, tile_b=8192):
    """Fused 3-layer MLP. x: (B, 5) float32. Returns (B, 1) float32."""
    w1, b1, w2, b2, w3, b3 = params
    B, din = x.shape
    assert din == 5

    # Clamp the tile so we never ask for a block bigger than the (128-rounded)
    # batch; keep it a multiple of 128 so the output block stays lane-aligned.
    tile_b = min(tile_b, max(128, (B // 128) * 128))
    num_tiles = pl.cdiv(B, tile_b)

    # Biases as (out, 1) f32 for lane-broadcast adds in the feature-major layout.
    b1c, b2c, b3c = (b.reshape(-1, 1).astype(jnp.float32) for b in (b1, b2, b3))

    def resident(arr):  # whole-array block, constant index -> DMA'd once, stays in VMEM
        return pl.BlockSpec(arr.shape, lambda i: (0, 0))

    out_t = pl.pallas_call(
        mlp_kernel,
        out_shape=jax.ShapeDtypeStruct((1, B), jnp.float32),
        grid=(num_tiles,),
        in_specs=[
            pl.BlockSpec((tile_b, din), lambda i: (i, 0)),  # streamed x tile (contiguous HBM)
            resident(w1), resident(b1c),
            resident(w2), resident(b2c),
            resident(w3), resident(b3c),
        ],
        out_specs=pl.BlockSpec((1, tile_b), lambda i: (0, i)),
        compiler_params=pltpu.CompilerParams(
            dimension_semantics=("parallel",),
            vmem_limit_bytes=32 * 1024 * 1024,
        ),
    )(x, w1, b1c, w2, b2c, w3, b3c)

    # (1, B) -> PyTorch-style (B, 1); free reshape, no copy of padded columns needed.
    return out_t.reshape(B, 1)


def init_params(key):
    """torch.nn.Linear-style init: W (out, in), b (out,), uniform(+/- 1/sqrt(fan_in))."""
    ks = jax.random.split(key, 6)

    def linear(kw, kb, fan_in, fan_out):
        bound = 1.0 / jnp.sqrt(jnp.float32(fan_in))
        w = jax.random.uniform(kw, (fan_out, fan_in), jnp.float32, -bound, bound)
        b = jax.random.uniform(kb, (fan_out,), jnp.float32, -bound, bound)
        return w, b

    w1, b1 = linear(ks[0], ks[1], 5, 16)
    w2, b2 = linear(ks[2], ks[3], 16, 16)
    w3, b3 = linear(ks[4], ks[5], 16, 1)
    return (w1, b1, w2, b2, w3, b3)


if __name__ == "__main__":
    key = jax.random.PRNGKey(0)
    pkey, xkey = jax.random.split(key)
    params = init_params(pkey)

    # Non-multiple of 128 on purpose: exercises the ragged last tile (masked edge
    # store) and the tile_b clamp path while staying small.
    B = 1000
    x = jax.random.normal(xkey, (B, 5), jnp.float32)

    out = jax.block_until_ready(netdiff_forward(x, params))

    # Pure-JAX f32 reference (same f32 weights -- no bf16 casts anywhere).
    w1, b1, w2, b2, w3, b3 = params
    ref = jnp.maximum(x @ w1.T + b1, 0.0)
    ref = jnp.maximum(ref @ w2.T + b2, 0.0)
    ref = ref @ w3.T + b3

    assert out.shape == (B, 1)
    assert jnp.allclose(out, ref, atol=2e-2, rtol=2e-2), float(
        jnp.max(jnp.abs(out - ref))
    )

    print("KERNEL_OK")
</pallas_src>

<mosaic_0001>
module attributes {stable_mosaic.version = 11 : i64} {
  func.func @mlp_kernel(%arg0: i32, %arg1: memref<896x5xf32, #tpu.memory_space<vmem>>, %arg2: memref<16x5xf32, #tpu.memory_space<vmem>>, %arg3: memref<16x1xf32, #tpu.memory_space<vmem>>, %arg4: memref<16x16xf32, #tpu.memory_space<vmem>>, %arg5: memref<16x1xf32, #tpu.memory_space<vmem>>, %arg6: memref<1x16xf32, #tpu.memory_space<vmem>>, %arg7: memref<1x1xf32, #tpu.memory_space<vmem>>, %arg8: memref<1x896xf32, #tpu.memory_space<vmem>>) attributes {dimension_semantics = [#tpu.dimension_semantics<parallel>], iteration_bounds = array<i64: 2>, scalar_prefetch = 0 : i64, scratch_operands = 0 : i64, tpu.core_type = #tpu.core_type<tc>, window_params = [{transform_indices = @transform_0, window_bounds = array<i64: 896, 5>}, {pipeline_mode = #tpu.pipeline_mode<synchronous>, transform_indices = @transform_1, window_bounds = array<i64: 16, 5>}, {pipeline_mode = #tpu.pipeline_mode<synchronous>, transform_indices = @transform_2, window_bounds = array<i64: 16, 1>}, {pipeline_mode = #tpu.pipeline_mode<synchronous>, transform_indices = @transform_3, window_bounds = array<i64: 16, 16>}, {pipeline_mode = #tpu.pipeline_mode<synchronous>, transform_indices = @transform_4, window_bounds = array<i64: 16, 1>}, {pipeline_mode = #tpu.pipeline_mode<synchronous>, transform_indices = @transform_5, window_bounds = array<i64: 1, 16>}, {pipeline_mode = #tpu.pipeline_mode<synchronous>, transform_indices = @transform_6, window_bounds = array<i64: 1, 1>}, {transform_indices = @transform_7, window_bounds = array<i64: 1, 896>}]} {
    %c0 = arith.constant 0 : index
    %c0_0 = arith.constant 0 : index
    %0 = vector.load %arg1[%c0, %c0_0] : memref<896x5xf32, #tpu.memory_space<vmem>>, vector<896x5xf32>
    %c0_1 = arith.constant 0 : index
    %c0_2 = arith.constant 0 : index
    %1 = vector.load %arg2[%c0_1, %c0_2] : memref<16x5xf32, #tpu.memory_space<vmem>>, vector<16x5xf32>
    %cst = arith.constant dense<0.000000e+00> : vector<16x896xf32>
    %2 = tpu.matmul %1, %0, %cst {dimension_numbers = #tpu.dot_dimension_numbers<[1], [1], [0], [0], [0, 0, 1, 0], [], []>} : vector<16x5xf32>, vector<896x5xf32>, vector<16x896xf32> -> vector<16x896xf32>
    %c0_3 = arith.constant 0 : index
    %c0_4 = arith.constant 0 : index
    %3 = vector.load %arg3[%c0_3, %c0_4] : memref<16x1xf32, #tpu.memory_space<vmem>>, vector<16x1xf32>
    %4 = vector.broadcast %3 : vector<16x1xf32> to vector<16x896xf32>
    %5 = arith.addf %2, %4 : vector<16x896xf32>
    %cst_5 = arith.constant 0.000000e+00 : f32
    %6 = vector.broadcast %cst_5 : f32 to vector<16x896xf32>
    %7 = arith.maximumf %5, %6 : vector<16x896xf32>
    %c0_6 = arith.constant 0 : index
    %c0_7 = arith.constant 0 : index
    %8 = vector.load %arg4[%c0_6, %c0_7] : memref<16x16xf32, #tpu.memory_space<vmem>>, vector<16x16xf32>
    %cst_8 = arith.constant dense<0.000000e+00> : vector<16x896xf32>
    %9 = tpu.matmul %8, %7, %cst_8 {dimension_numbers = #tpu.dot_dimension_numbers<[1], [0], [0], [1], [0, 0, 1, 1], [], []>} : vector<16x16xf32>, vector<16x896xf32>, vector<16x896xf32> -> vector<16x896xf32>
    %c0_9 = arith.constant 0 : index
    %c0_10 = arith.constant 0 : index
    %10 = vector.load %arg5[%c0_9, %c0_10] : memref<16x1xf32, #tpu.memory_space<vmem>>, vector<16x1xf32>
    %11 = vector.broadcast %10 : vector<16x1xf32> to vector<16x896xf32>
    %12 = arith.addf %9, %11 : vector<16x896xf32>
    %cst_11 = arith.constant 0.000000e+00 : f32
    %13 = vector.broadcast %cst_11 : f32 to vector<16x896xf32>
    %14 = arith.maximumf %12, %13 : vector<16x896xf32>
    %c0_12 = arith.constant 0 : index
    %c0_13 = arith.constant 0 : index
    %15 = vector.load %arg6[%c0_12, %c0_13] : memref<1x16xf32, #tpu.memory_space<vmem>>, vector<1x16xf32>
    %cst_14 = arith.constant dense<0.000000e+00> : vector<1x896xf32>
    %16 = tpu.matmul %15, %14, %cst_14 {dimension_numbers = #tpu.dot_dimension_numbers<[1], [0], [0], [1], [0, 0, 1, 1], [], []>} : vector<1x16xf32>, vector<16x896xf32>, vector<1x896xf32> -> vector<1x896xf32>
    %c0_15 = arith.constant 0 : index
    %c0_16 = arith.constant 0 : index
    %17 = vector.load %arg7[%c0_15, %c0_16] : memref<1x1xf32, #tpu.memory_space<vmem>>, vector<1x1xf32>
    %18 = vector.broadcast %17 : vector<1x1xf32> to vector<1x896xf32>
    %19 = arith.addf %16, %18 : vector<1x896xf32>
    %c0_17 = arith.constant 0 : index
    %c0_18 = arith.constant 0 : index
    %20 = vector.load %arg8[%c0_17, %c0_18] : memref<1x896xf32, #tpu.memory_space<vmem>>, vector<1x896xf32>
    tpu.vector_store %arg8[%c0_17, %c0_18], %19 {strides = array<i32>} : memref<1x896xf32, #tpu.memory_space<vmem>>, vector<1x896xf32>,
    return
  }
  func.func @transform_0(%arg0: i32) -> (i32, i32) {
    %c0_i32 = arith.constant 0 : i32
    %c0_i32_0 = arith.constant 0 : i32
    return %arg0, %c0_i32 : i32, i32
  }
  func.func @transform_1(%arg0: i32) -> (i32, i32) {
    %c0_i32 = arith.constant 0 : i32
    %c0_i32_0 = arith.constant 0 : i32
    %c0_i32_1 = arith.constant 0 : i32
    return %c0_i32, %c0_i32_0 : i32, i32
  }
  func.func @transform_2(%arg0: i32) -> (i32, i32) {
    %c0_i32 = arith.constant 0 : i32
    %c0_i32_0 = arith.constant 0 : i32
    %c0_i32_1 = arith.constant 0 : i32
    return %c0_i32, %c0_i32_0 : i32, i32
  }
  func.func @transform_3(%arg0: i32) -> (i32, i32) {
    %c0_i32 = arith.constant 0 : i32
    %c0_i32_0 = arith.constant 0 : i32
    %c0_i32_1 = arith.constant 0 : i32
    return %c0_i32, %c0_i32_0 : i32, i32
  }
  func.func @transform_4(%arg0: i32) -> (i32, i32) {
    %c0_i32 = arith.constant 0 : i32
    %c0_i32_0 = arith.constant 0 : i32
    %c0_i32_1 = arith.constant 0 : i32
    return %c0_i32, %c0_i32_0 : i32, i32
  }
  func.func @transform_5(%arg0: i32) -> (i32, i32) {
    %c0_i32 = arith.constant 0 : i32
    %c0_i32_0 = arith.constant 0 : i32
    %c0_i32_1 = arith.constant 0 : i32
    return %c0_i32, %c0_i32_0 : i32, i32
  }
  func.func @transform_6(%arg0: i32) -> (i32, i32) {
    %c0_i32 = arith.constant 0 : i32
    %c0_i32_0 = arith.constant 0 : i32
    %c0_i32_1 = arith.constant 0 : i32
    return %c0_i32, %c0_i32_0 : i32, i32
  }
  func.func @transform_7(%arg0: i32) -> (i32, i32) {
    %c0_i32 = arith.constant 0 : i32
    %c0_i32_0 = arith.constant 0 : i32
    return %c0_i32, %arg0 : i32, i32
  }
}

</mosaic_0001>

<llo_original>
// kernel: tpu_custom_call.1
$region0: #{tpu_custom_call.1}
  #allocation0 [shape = 'u32[]', space=smem, size = 0x4, offset = 0x4, fixed_abs, tag = 'smem constant byte address 0x4 - core index']
  #allocation1 [shape = 'u32[144,128]{1,0:T(1,128)}', space=vmem, size = 0x12000, scoped, tag = 'internal scratch']
  #allocation2 [shape = 'f32[1,1]{1,0:T(1,128)S(1)}', space=vmem, size = 0x200, scoped, tag = 'scoped memory for tpu_custom_call.1']
  %s0 = inlined_call_operand.vmem [shape: f32[1000,5], index: 0, kind: input, shape index: {}]
  %s1 = inlined_call_operand.vmem [shape: f32[16,5], index: 1, kind: input, shape index: {}]
  %s2 = inlined_call_operand.vmem [shape: f32[16,1], index: 2, kind: input, shape index: {}]
  %s3 = inlined_call_operand.vmem [shape: f32[16,16], index: 3, kind: input, shape index: {}]
  %s4 = inlined_call_operand.vmem [shape: f32[16,1], index: 4, kind: input, shape index: {}]
  %s5 = inlined_call_operand.vmem [shape: f32[1,16], index: 5, kind: input, shape index: {}]
  %s6 = inlined_call_operand.<no memory space> [shape: f32[1,1], index: 6, kind: input, shape index: {}]
  %s7 = inlined_call_operand.hbm [shape: f32[1,1000], index: 7, kind: output, shape index: {}]
  %s8 = sld [smem:[#allocation0]]
  $region61: #{tpu_custom_call.1} parent=0
    _
  %s10 = ssub.s32 1, %s8
  %s11 = scalar_select 0, %s10, %s8
  %v12 = vstv %s6
  %13 = vst [vmem:[#allocation2] sm:$0x1] %v12
  $region1: #{tpu_custom_call.1} parent=0
    #allocation3 [shape = 'u8[7168]{0}', space=vmem, size = 0x1c00, scoped, tag = 'output window, operand 0']
    #allocation4 [shape = 's32[2]{0}', space=sflag, size = 0x8, scoped, tag = 'scoped memory for tpu_custom_call.1']
    %14 = vsyncpa [#allocation4], 0
    %s15 = scalar_lea.sflag [#allocation4], 1
    %16 = vsyncpa %s15, 0
    loop: start=0, step=1, limit=4
    $region2: #{tpu_custom_call.1} parent=1 // loop_pre_header
      _
    $region3: #{tpu_custom_call.1} parent=1 // loop_header
      %s18 = sphi 0, %s22
      %p19 = scmp.ge.s32.totalorder %s18, 4
      %s28 = sphi 0, %s30
      %s31 = sphi 0, %s28
      %s32 = sphi 0, %s31
      %s48 = sphi 0, %s32
      %s52 = sphi 0, %s52
      %s54 = sphi 0, %s52
      %s55 = sphi 0, %s54
      %s69 = sphi 0, %s55
      %s73 = sphi 0, %s73
      %s75 = sphi 0, %s73
      %s76 = sphi 0, %s75
      %s90 = sphi 0, %s76
      %s94 = sphi 0, %s94
      %s96 = sphi 0, %s94
      %s97 = sphi 0, %s96
      %s111 = sphi 0, %s97
      %s115 = sphi 0, %s115
      %s117 = sphi 0, %s115
      %s118 = sphi 0, %s117
      %s132 = sphi 0, %s118
      %s136 = sphi 0, %s136
      %s138 = sphi 0, %s136
      %s139 = sphi 0, %s138
      %s153 = sphi 0, %s139
      %s157 = sphi 0, %s157
      %s159 = sphi 0, %s157
      %s160 = sphi 0, %s159
      %s174 = sphi 0, %s160
      %s180 = sphi 0, %s182
      %s183 = sphi 0, %s180
      %s184 = sphi 0, %s183
      %s200 = sphi 0, %s184
    $region4: #{tpu_custom_call.1} parent=1 // loop_header_branch
      %21 = sbr.rel (%p19) target = $region8
    $region5: #{tpu_custom_call.1} parent=1 // loop_body
      %s23 = ssub.s32 %s18, 1
      %s24 = ssub.s32 %s18, 2
      %s25 = sadd.s32 %s18, 1
      %s26 = ssub.s32 %s18, %s25
      %p27 = scmp.eq.s32.totalorder %s26, 0
      %s29 = sadd.s32 %s28, 1
      %s30 = scalar_select %p27, %s28, %s29
      %p33 = pneg %p27
      %p34 = scmp.eq.s32.totalorder %s18, 1
      %p35 = por %p33, %p34
      %p36 = scmp.ne.s32.totalorder %s28, %s31
      %p37 = scmp.eq.s32.totalorder %s18, 0
      %p38 = por %p36, %p37
      %p39 = scmp.ne.s32.totalorder %s28, %s31
      %p40 = scmp.eq.s32.totalorder %s23, 1
      %p41 = por %p39, %p40
      %p42 = scmp.ne.s32.totalorder %s31, %s32
      %p43 = scmp.eq.s32.totalorder %s23, 0
      %p44 = por %p42, %p43
      %p45 = scmp.ne.s32.totalorder %s31, %s32
      %p46 = scmp.eq.s32.totalorder %s24, 1
      %p47 = por %p45, %p46
      %p49 = scmp.ne.s32.totalorder %s32, %s48
      %p50 = scmp.eq.s32.totalorder %s24, 0
      %p51 = por %p49, %p50
      %s53 = sadd.s32 %s52, 1
      %p56 = scmp.eq.s32.totalorder %s18, 1
      %p57 = scmp.ne.s32.totalorder %s52, %s54
      %p58 = scmp.eq.s32.totalorder %s18, 0
      %p59 = por %p57, %p58
      %p60 = scmp.ne.s32.totalorder %s52, %s54
      %p61 = scmp.eq.s32.totalorder %s23, 1
      %p62 = por %p60, %p61
      %p63 = scmp.ne.s32.totalorder %s54, %s55
      %p64 = scmp.eq.s32.totalorder %s23, 0
      %p65 = por %p63, %p64
      %p66 = scmp.ne.s32.totalorder %s54, %s55
      %p67 = scmp.eq.s32.totalorder %s24, 1
      %p68 = por %p66, %p67
      %p70 = scmp.ne.s32.totalorder %s55, %s69
      %p71 = scmp.eq.s32.totalorder %s24, 0
      %p72 = por %p70, %p71
      %s74 = sadd.s32 %s73, 1
      %p77 = scmp.eq.s32.totalorder %s18, 1
      %p78 = scmp.ne.s32.totalorder %s73, %s75
      %p79 = scmp.eq.s32.totalorder %s18, 0
      %p80 = por %p78, %p79
      %p81 = scmp.ne.s32.totalorder %s73, %s75
      %p82 = scmp.eq.s32.totalorder %s23, 1
      %p83 = por %p81, %p82
      %p84 = scmp.ne.s32.totalorder %s75, %s76
      %p85 = scmp.eq.s32.totalorder %s23, 0
      %p86 = por %p84, %p85
      %p87 = scmp.ne.s32.totalorder %s75, %s76
      %p88 = scmp.eq.s32.totalorder %s24, 1
      %p89 = por %p87, %p88
      %p91 = scmp.ne.s32.totalorder %s76, %s90
      %p92 = scmp.eq.s32.totalorder %s24, 0
      %p93 = por %p91, %p92
      %s95 = sadd.s32 %s94, 1
      %p98 = scmp.eq.s32.totalorder %s18, 1
      %p99 = scmp.ne.s32.totalorder %s94, %s96
      %p100 = scmp.eq.s32.totalorder %s18, 0
      %p101 = por %p99, %p100
      %p102 = scmp.ne.s32.totalorder %s94, %s96
      %p103 = scmp.eq.s32.totalorder %s23, 1
      %p104 = por %p102, %p103
      %p105 = scmp.ne.s32.totalorder %s96, %s97
      %p106 = scmp.eq.s32.totalorder %s23, 0
      %p107 = por %p105, %p106
      %p108 = scmp.ne.s32.totalorder %s96, %s97
      %p109 = scmp.eq.s32.totalorder %s24, 1
      %p110 = por %p108, %p109
      %p112 = scmp.ne.s32.totalorder %s97, %s111
      %p113 = scmp.eq.s32.totalorder %s24, 0
      %p114 = por %p112, %p113
      %s116 = sadd.s32 %s115, 1
      %p119 = scmp.eq.s32.totalorder %s18, 1
      %p120 = scmp.ne.s32.totalorder %s115, %s117
      %p121 = scmp.eq.s32.totalorder %s18, 0
      %p122 = por %p120, %p121
      %p123 = scmp.ne.s32.totalorder %s115, %s117
      %p124 = scmp.eq.s32.totalorder %s23, 1
      %p125 = por %p123, %p124
      %p126 = scmp.ne.s32.totalorder %s117, %s118
      %p127 = scmp.eq.s32.totalorder %s23, 0
      %p128 = por %p126, %p127
      %p129 = scmp.ne.s32.totalorder %s117, %s118
      %p130 = scmp.eq.s32.totalorder %s24, 1
      %p131 = por %p129, %p130
      %p133 = scmp.ne.s32.totalorder %s118, %s132
      %p134 = scmp.eq.s32.totalorder %s24, 0
      %p135 = por %p133, %p134
      %s137 = sadd.s32 %s136, 1
      %p140 = scmp.eq.s32.totalorder %s18, 1
      %p141 = scmp.ne.s32.totalorder %s136, %s138
      %p142 = scmp.eq.s32.totalorder %s18, 0
      %p143 = por %p141, %p142
      %p144 = scmp.ne.s32.totalorder %s136, %s138
      %p145 = scmp.eq.s32.totalorder %s23, 1
      %p146 = por %p144, %p145
      %p147 = scmp.ne.s32.totalorder %s138, %s139
      %p148 = scmp.eq.s32.totalorder %s23, 0
      %p149 = por %p147, %p148
      %p150 = scmp.ne.s32.totalorder %s138, %s139
      %p151 = scmp.eq.s32.totalorder %s24, 1
      %p152 = por %p150, %p151
      %p154 = scmp.ne.s32.totalorder %s139, %s153
      %p155 = scmp.eq.s32.totalorder %s24, 0
      %p156 = por %p154, %p155
      %s158 = sadd.s32 %s157, 1
      %p161 = scmp.eq.s32.totalorder %s18, 1
      %p162 = scmp.ne.s32.totalorder %s157, %s159
      %p163 = scmp.eq.s32.totalorder %s18, 0
      %p164 = por %p162, %p163
      %p165 = scmp.ne.s32.totalorder %s157, %s159
      %p166 = scmp.eq.s32.totalorder %s23, 1
      %p167 = por %p165, %p166
      %p168 = scmp.ne.s32.totalorder %s159, %s160
      %p169 = scmp.eq.s32.totalorder %s23, 0
      %p170 = por %p168, %p169
      %p171 = scmp.ne.s32.totalorder %s159, %s160
      %p172 = scmp.eq.s32.totalorder %s24, 1
      %p173 = por %p171, %p172
      %p175 = scmp.ne.s32.totalorder %s160, %s174
      %p176 = scmp.eq.s32.totalorder %s24, 0
      %p177 = por %p175, %p176
      %s178 = ssub.s32 %s18, %s25
      %p179 = scmp.eq.s32.totalorder %s178, 0
      %s181 = sadd.s32 %s180, 1
      %s182 = scalar_select %p179, %s180, %s181
      %p185 = pneg %p179
      %p186 = scmp.eq.s32.totalorder %s18, 1
      %p187 = por %p185, %p186
      %p188 = scmp.ne.s32.totalorder %s180, %s183
      %p189 = scmp.eq.s32.totalorder %s18, 0
      %p190 = por %p188, %p189
      %p191 = scmp.ne.s32.totalorder %s180, %s183
      %p192 = scmp.eq.s32.totalorder %s23, 1
      %p193 = por %p191, %p192
      %p194 = scmp.ne.s32.totalorder %s183, %s184
      %p195 = scmp.eq.s32.totalorder %s23, 0
      %p196 = por %p194, %p195
      %p197 = scmp.ne.s32.totalorder %s183, %s184
      %p198 = scmp.eq.s32.totalorder %s24, 1
      %p199 = por %p197, %p198
      %p201 = scmp.ne.s32.totalorder %s184, %s200
      %p202 = scmp.eq.s32.totalorder %s24, 0
      %p203 = por %p201, %p202
      %p204 = scmp.le.s32.totalorder 1, %s18
      %p205 = scmp.lt.s32.totalorder %s18, 3
      %p206 = pnand %p204, %p205
      %p207 = pneg %p206
      // Predicated region
      $region9: #{tpu_custom_call.1} parent=5 // pred_check
        _
      $region10: #{tpu_custom_call.1} parent=5 // pred_check_branch
        %209 = sbr.rel (%p206) target = $region12
      $region11: #{tpu_custom_call.1} parent=5 // pred_region
        %s210 = ssub.s32 %s18, 1
        // Predicated region
        $region13: #{tpu_custom_call.1} parent=11 // pred_check
          %p211 = pneg %p65
        $region14: #{tpu_custom_call.1} parent=11 // pred_check_branch
          %213 = sbr.rel (%p211) target = $region16
        $region15: #{tpu_custom_call.1} parent=11 // pred_region
          _
        $region16: #{tpu_custom_call.1} parent=11 // pred_fallthru
          _
        // Predicated region
        $region17: #{tpu_custom_call.1} parent=11 // pred_check
          %p214 = pneg %p86
        $region18: #{tpu_custom_call.1} parent=11 // pred_check_branch
          %216 = sbr.rel (%p214) target = $region20
        $region19: #{tpu_custom_call.1} parent=11 // pred_region
          _
        $region20: #{tpu_custom_call.1} parent=11 // pred_fallthru
          _
        // Predicated region
        $region21: #{tpu_custom_call.1} parent=11 // pred_check
          %p217 = pneg %p107
        $region22: #{tpu_custom_call.1} parent=11 // pred_check_branch
          %219 = sbr.rel (%p217) target = $region24
        $region23: #{tpu_custom_call.1} parent=11 // pred_region
          _
        $region24: #{tpu_custom_call.1} parent=11 // pred_fallthru
          _
        // Predicated region
        $region25: #{tpu_custom_call.1} parent=11 // pred_check
          %p220 = pneg %p128
        $region26: #{tpu_custom_call.1} parent=11 // pred_check_branch
          %222 = sbr.rel (%p220) target = $region28
        $region27: #{tpu_custom_call.1} parent=11 // pred_region
          _
        $region28: #{tpu_custom_call.1} parent=11 // pred_fallthru
          _
        // Predicated region
        $region29: #{tpu_custom_call.1} parent=11 // pred_check
          %p223 = pneg %p149
        $region30: #{tpu_custom_call.1} parent=11 // pred_check_branch
          %225 = sbr.rel (%p223) target = $region32
        $region31: #{tpu_custom_call.1} parent=11 // pred_region
          _
        $region32: #{tpu_custom_call.1} parent=11 // pred_fallthru
          _
        // Predicated region
        $region33: #{tpu_custom_call.1} parent=11 // pred_check
          %p226 = pneg %p170
        $region34: #{tpu_custom_call.1} parent=11 // pred_check_branch
          %228 = sbr.rel (%p226) target = $region36
        $region35: #{tpu_custom_call.1} parent=11 // pred_region
          _
        $region36: #{tpu_custom_call.1} parent=11 // pred_fallthru
          _
      $region12: #{tpu_custom_call.1} parent=5 // pred_fallthru
        _
      %p229 = scmp.lt.s32.totalorder %s18, 2
      // Predicated region
      $region37: #{tpu_custom_call.1} parent=5 // pred_check
        %p230 = pneg %p229
      $region38: #{tpu_custom_call.1} parent=5 // pred_check_branch
        %232 = sbr.rel (%p230) target = $region40
      $region39: #{tpu_custom_call.1} parent=5 // pred_region
        // Predicated region
        $region41: #{tpu_custom_call.1} parent=39 // pred_check
          %p233 = pneg %p38
        $region42: #{tpu_custom_call.1} parent=39 // pred_check_branch
          %235 = sbr.rel (%p233) target = $region44
        $region43: #{tpu_custom_call.1} parent=39 // pred_region
          %s236 = smul.u32 112, %s18
          %s237 = ssub.s32 125, %s236
          %p238 = scmp.lt.s32.totalorder %s237, 112
          %s239 = scalar_select %p238, %s237, 112
          %s240 = smul.u32 128, %s239
          %p241 = scmp.lt.s32.totalorder %s236, 124
          %s242 = scalar_select %p241, %s236, 124
          %s243 = smul.addr %s242, 8
          %s244 = scalar_lea.vmem %s0, %s243
          %s245 = smul.u32 112, %s18
          %s246 = ssub.s32 125, %s245
          %p247 = scmp.lt.s32.totalorder %s246, 112
          %s248 = scalar_select %p247, %s246, 112
          %s249 = smul.u32 128, %s248
        $region44: #{tpu_custom_call.1} parent=39 // pred_fallthru
          _
      $region40: #{tpu_custom_call.1} parent=5 // pred_fallthru
        _
      %p250 = scmp.le.s32.totalorder 1, %s18
      %p251 = scmp.lt.s32.totalorder %s18, 3
      %p252 = pnand %p250, %p251
      %p253 = pneg %p252
      // Predicated region
      $region45: #{tpu_custom_call.1} parent=5 // pred_check
        _
      $region46: #{tpu_custom_call.1} parent=5 // pred_check_branch
        %255 = sbr.rel (%p252) target = $region48
      $region47: #{tpu_custom_call.1} parent=5 // pred_region
        %s256 = ssub.s32 %s18, 1
        %s257 = smul.u32 112, %s23
        %s258 = ssub.s32 125, %s257
        %p259 = scmp.lt.s32.totalorder %s258, 112
        %s260 = scalar_select %p259, %s258, 112
        %s261 = smul.u32 128, %s260
        %p262 = scmp.lt.s32.totalorder %s257, 124
        %s263 = scalar_select %p262, %s257, 124
        %s264 = smul.addr %s263, 8
        %s265 = scalar_lea.vmem %s0, %s264
        %p266 = pneg %p44
        %p267 = pneg %p41
        %p268 = pneg %p65
        %p269 = pneg %p62
        %p270 = pneg %p86
        %p271 = pneg %p83
        %p272 = pneg %p107
        %p273 = pneg %p104
        %p274 = pneg %p128
        %p275 = pneg %p125
        %p276 = pneg %p149
        %p277 = pneg %p146
        %p278 = pneg %p170
        %p279 = pneg %p167
        %p280 = pneg %p196
        %p281 = pneg %p193
        %s282 = sand.u32 %s183, 1
        %s283 = scalar_lea.sflag [#allocation4], %s282
        %s284 = sand.u32 %s183, 1
        %s285 = smul.addr %s284, 7
        %s286 = scalar_lea.vmem [#allocation3], %s285
        %s287 = smul.u32 112, %s23
        %s288 = ssub.s32 125, %s287
        %p289 = scmp.lt.s32.totalorder %s288, 112
        %s290 = scalar_select %p289, %s288, 112
        %s291 = smul.u32 128, %s290
        %p292 = scmp.lt.s32.totalorder %s287, 124
        %s293 = scalar_select %p292, %s287, 124
        %s294 = smul.addr %s293, 8
        %s295 = scalar_lea.vmem %s0, %s294
        %s296 = smul.u32 112, %s23
        %s297 = ssub.s32 125, %s296
        %p298 = scmp.lt.s32.totalorder %s297, 112
        %s299 = scalar_select %p298, %s297, 112
        %s300 = smul.u32 128, %s299
        %s301 = smul.u32 7, %s23
        %s302 = ssub.s32 8, %s301
        %p303 = scmp.lt.s32.totalorder %s302, 7
        %s304 = scalar_select %p303, %s302, 7
        %s305 = smul.u32 16, %s304
        %v306 = vld [vmem:[%s295] sm:$0xff]
        %v307 = vld [vmem:[%s295 + $0x8] sm:$0xff]
        %v308 = vld [vmem:[%s295 + $0x10] sm:$0xff]
        %v309 = vld [vmem:[%s295 + $0x18] sm:$0xff]
        %v310 = vld [vmem:[%s295 + $0x20] sm:$0xff]
        %v311 = vld [vmem:[%s295 + $0x28] sm:$0xff]
        %v312 = vld [vmem:[%s295 + $0x30] sm:$0xff]
        %v313 = vld [vmem:[%s295 + $0x38] sm:$0xff]
        %v314 = vld [vmem:[%s295 + $0x40] sm:$0xff]
        %v315 = vld [vmem:[%s295 + $0x48] sm:$0xff]
        %v316 = vld [vmem:[%s295 + $0x50] sm:$0xff]
        %v317 = vld [vmem:[%s295 + $0x58] sm:$0xff]
        %v318 = vld [vmem:[%s295 + $0x60] sm:$0xff]
        %v319 = vld [vmem:[%s295 + $0x68] sm:$0xff]
        %v320 = vld [vmem:[%s295 + $0x70] sm:$0xff]
        %v321 = vld [vmem:[%s295 + $0x78] sm:$0xff]
        %v322 = vld [vmem:[%s295 + $0x80] sm:$0xff]
        %v323 = vld [vmem:[%s295 + $0x88] sm:$0xff]
        %v324 = vld [vmem:[%s295 + $0x90] sm:$0xff]
        %v325 = vld [vmem:[%s295 + $0x98] sm:$0xff]
        %v326 = vld [vmem:[%s295 + $0xa0] sm:$0xff]
        %v327 = vld [vmem:[%s295 + $0xa8] sm:$0xff]
        %v328 = vld [vmem:[%s295 + $0xb0] sm:$0xff]
        %v329 = vld [vmem:[%s295 + $0xb8] sm:$0xff]
        %v330 = vld [vmem:[%s295 + $0xc0] sm:$0xff]
        %v331 = vld [vmem:[%s295 + $0xc8] sm:$0xff]
        %v332 = vld [vmem:[%s295 + $0xd0] sm:$0xff]
        %v333 = vld [vmem:[%s295 + $0xd8] sm:$0xff]
        %v334 = vld [vmem:[%s295 + $0xe0] sm:$0xff]
        %v335 = vld [vmem:[%s295 + $0xe8] sm:$0xff]
        %v336 = vld [vmem:[%s295 + $0xf0] sm:$0xff]
        %v337 = vld [vmem:[%s295 + $0xf8] sm:$0xff]
        %v338 = vld [vmem:[%s295 + $0x100] sm:$0xff]
        %v339 = vld [vmem:[%s295 + $0x108] sm:$0xff]
        %v340 = vld [vmem:[%s295 + $0x110] sm:$0xff]
        %v341 = vld [vmem:[%s295 + $0x118] sm:$0xff]
        %v342 = vld [vmem:[%s295 + $0x120] sm:$0xff]
        %v343 = vld [vmem:[%s295 + $0x128] sm:$0xff]
        %v344 = vld [vmem:[%s295 + $0x130] sm:$0xff]
        %v345 = vld [vmem:[%s295 + $0x138] sm:$0xff]
        %v346 = vld [vmem:[%s295 + $0x140] sm:$0xff]
        %v347 = vld [vmem:[%s295 + $0x148] sm:$0xff]
        %v348 = vld [vmem:[%s295 + $0x150] sm:$0xff]
        %v349 = vld [vmem:[%s295 + $0x158] sm:$0xff]
        %v350 = vld [vmem:[%s295 + $0x160] sm:$0xff]
        %v351 = vld [vmem:[%s295 + $0x168] sm:$0xff]
        %v352 = vld [vmem:[%s295 + $0x170] sm:$0xff]
        %v353 = vld [vmem:[%s295 + $0x178] sm:$0xff]
        %v354 = vld [vmem:[%s295 + $0x180] sm:$0xff]
        %v355 = vld [vmem:[%s295 + $0x188] sm:$0xff]
        %v356 = vld [vmem:[%s295 + $0x190] sm:$0xff]
        %v357 = vld [vmem:[%s295 + $0x198] sm:$0xff]
        %v358 = vld [vmem:[%s295 + $0x1a0] sm:$0xff]
        %v359 = vld [vmem:[%s295 + $0x1a8] sm:$0xff]
        %v360 = vld [vmem:[%s295 + $0x1b0] sm:$0xff]
        %v361 = vld [vmem:[%s295 + $0x1b8] sm:$0xff]
        %v362 = vld [vmem:[%s295 + $0x1c0] sm:$0xff]
        %v363 = vld [vmem:[%s295 + $0x1c8] sm:$0xff]
        %v364 = vld [vmem:[%s295 + $0x1d0] sm:$0xff]
        %v365 = vld [vmem:[%s295 + $0x1d8] sm:$0xff]
        %v366 = vld [vmem:[%s295 + $0x1e0] sm:$0xff]
        %v367 = vld [vmem:[%s295 + $0x1e8] sm:$0xff]
        %v368 = vld [vmem:[%s295 + $0x1f0] sm:$0xff]
        %v369 = vld [vmem:[%s295 + $0x1f8] sm:$0xff]
        %v370 = vld [vmem:[%s295 + $0x200] sm:$0xff]
        %v371 = vld [vmem:[%s295 + $0x208] sm:$0xff]
        %v372 = vld [vmem:[%s295 + $0x210] sm:$0xff]
        %v373 = vld [vmem:[%s295 + $0x218] sm:$0xff]
        %v374 = vld [vmem:[%s295 + $0x220] sm:$0xff]
        %v375 = vld [vmem:[%s295 + $0x228] sm:$0xff]
        %v376 = vld [vmem:[%s295 + $0x230] sm:$0xff]
        %v377 = vld [vmem:[%s295 + $0x238] sm:$0xff]
        %v378 = vld [vmem:[%s295 + $0x240] sm:$0xff]
        %v379 = vld [vmem:[%s295 + $0x248] sm:$0xff]
        %v380 = vld [vmem:[%s295 + $0x250] sm:$0xff]
        %v381 = vld [vmem:[%s295 + $0x258] sm:$0xff]
        %v382 = vld [vmem:[%s295 + $0x260] sm:$0xff]
        %v383 = vld [vmem:[%s295 + $0x268] sm:$0xff]
        %v384 = vld [vmem:[%s295 + $0x270] sm:$0xff]
        %v385 = vld [vmem:[%s295 + $0x278] sm:$0xff]
        %v386 = vld [vmem:[%s295 + $0x280] sm:$0xff]
        %v387 = vld [vmem:[%s295 + $0x288] sm:$0xff]
        %v388 = vld [vmem:[%s295 + $0x290] sm:$0xff]
        %v389 = vld [vmem:[%s295 + $0x298] sm:$0xff]
        %v390 = vld [vmem:[%s295 + $0x2a0] sm:$0xff]
        %v391 = vld [vmem:[%s295 + $0x2a8] sm:$0xff]
        %v392 = vld [vmem:[%s295 + $0x2b0] sm:$0xff]
        %v393 = vld [vmem:[%s295 + $0x2b8] sm:$0xff]
        %v394 = vld [vmem:[%s295 + $0x2c0] sm:$0xff]
        %v395 = vld [vmem:[%s295 + $0x2c8] sm:$0xff]
        %v396 = vld [vmem:[%s295 + $0x2d0] sm:$0xff]
        %v397 = vld [vmem:[%s295 + $0x2d8] sm:$0xff]
        %v398 = vld [vmem:[%s295 + $0x2e0] sm:$0xff]
        %v399 = vld [vmem:[%s295 + $0x2e8] sm:$0xff]
        %v400 = vld [vmem:[%s295 + $0x2f0] sm:$0xff]
        %v401 = vld [vmem:[%s295 + $0x2f8] sm:$0xff]
        %v402 = vld [vmem:[%s295 + $0x300] sm:$0xff]
        %v403 = vld [vmem:[%s295 + $0x308] sm:$0xff]
        %v404 = vld [vmem:[%s295 + $0x310] sm:$0xff]
        %v405 = vld [vmem:[%s295 + $0x318] sm:$0xff]
        %v406 = vld [vmem:[%s295 + $0x320] sm:$0xff]
        %v407 = vld [vmem:[%s295 + $0x328] sm:$0xff]
        %v408 = vld [vmem:[%s295 + $0x330] sm:$0xff]
        %v409 = vld [vmem:[%s295 + $0x338] sm:$0xff]
        %v410 = vld [vmem:[%s295 + $0x340] sm:$0xff]
        %v411 = vld [vmem:[%s295 + $0x348] sm:$0xff]
        %v412 = vld [vmem:[%s295 + $0x350] sm:$0xff]
        %v413 = vld [vmem:[%s295 + $0x358] sm:$0xff]
        %v414 = vld [vmem:[%s295 + $0x360] sm:$0xff]
        %v415 = vld [vmem:[%s295 + $0x368] sm:$0xff]
        %v416 = vld [vmem:[%s295 + $0x370] sm:$0xff]
        %v417 = vld [vmem:[%s295 + $0x378] sm:$0xff]
        %v418 = vld [vmem:[%s1] sm:$0xff]
        %v419 = vld [vmem:[%s1 + $0x8] sm:$0xff]
        %v420 = vld [vmem:[%s2] sm:$0xff]
        %v421 = vld [vmem:[%s2 + $0x8] sm:$0xff]
        %423 = vset.pattern.permute.xlu0 0
        %424 = vperm.xlu0 %423, %v420
        %v425 = vpop.permute.xlu0 %424
        %428 = vset.pattern.permute.xlu0 0
        %429 = vperm.xlu0 %428, %v421
        %v430 = vpop.permute.xlu0 %429
        %vm432 = vcmask 39936
        %v434 = vsel %vm432, %v418, 0
        %v437 = vsel %vm432, %v419, 0
        %v440 = vsel %vm432, %v306, 0
        %v443 = vsel %vm432, %v307, 0
        %v446 = vsel %vm432, %v308, 0
        %v449 = vsel %vm432, %v309, 0
        %v452 = vsel %vm432, %v310, 0
        %v455 = vsel %vm432, %v311, 0
        %v458 = vsel %vm432, %v312, 0
        %v461 = vsel %vm432, %v313, 0
        %v464 = vsel %vm432, %v314, 0
        %v467 = vsel %vm432, %v315, 0
        %v470 = vsel %vm432, %v316, 0
        %v473 = vsel %vm432, %v317, 0
        %v476 = vsel %vm432, %v318, 0
        %v479 = vsel %vm432, %v319, 0
        %v482 = vsel %vm432, %v320, 0
        %v485 = vsel %vm432, %v321, 0
        %v488 = vsel %vm432, %v322, 0
        %v491 = vsel %vm432, %v323, 0
        %v494 = vsel %vm432, %v324, 0
        %v497 = vsel %vm432, %v325, 0
        %v500 = vsel %vm432, %v326, 0
        %v503 = vsel %vm432, %v327, 0
        %v506 = vsel %vm432, %v328, 0
        %v509 = vsel %vm432, %v329, 0
        %v512 = vsel %vm432, %v330, 0
        %v515 = vsel %vm432, %v331, 0
        %v518 = vsel %vm432, %v332, 0
        %v521 = vsel %vm432, %v333, 0
        %v524 = vsel %vm432, %v334, 0
        %v527 = vsel %vm432, %v335, 0
        %v530 = vsel %vm432, %v336, 0
        %v533 = vsel %vm432, %v337, 0
        %v536 = vsel %vm432, %v338, 0
        %v539 = vsel %vm432, %v339, 0
        %v542 = vsel %vm432, %v340, 0
        %v545 = vsel %vm432, %v341, 0
        %v548 = vsel %vm432, %v342, 0
        %v551 = vsel %vm432, %v343, 0
        %v554 = vsel %vm432, %v344, 0
        %v557 = vsel %vm432, %v345, 0
        %v560 = vsel %vm432, %v346, 0
        %v563 = vsel %vm432, %v347, 0
        %v566 = vsel %vm432, %v348, 0
        %v569 = vsel %vm432, %v349, 0
        %v572 = vsel %vm432, %v350, 0
        %v575 = vsel %vm432, %v351, 0
        %v578 = vsel %vm432, %v352, 0
        %v581 = vsel %vm432, %v353, 0
        %v584 = vsel %vm432, %v354, 0
        %v587 = vsel %vm432, %v355, 0
        %v590 = vsel %vm432, %v356, 0
        %v593 = vsel %vm432, %v357, 0
        %v596 = vsel %vm432, %v358, 0
        %v599 = vsel %vm432, %v359, 0
        %v602 = vsel %vm432, %v360, 0
        %v605 = vsel %vm432, %v361, 0
        %v608 = vsel %vm432, %v362, 0
        %v611 = vsel %vm432, %v363, 0
        %v614 = vsel %vm432, %v364, 0
        %v617 = vsel %vm432, %v365, 0
        %v620 = vsel %vm432, %v366, 0
        %v623 = vsel %vm432, %v367, 0
        %v626 = vsel %vm432, %v368, 0
        %v629 = vsel %vm432, %v369, 0
        %v632 = vsel %vm432, %v370, 0
        %v635 = vsel %vm432, %v371, 0
        %v638 = vsel %vm432, %v372, 0
        %v641 = vsel %vm432, %v373, 0
        %v644 = vsel %vm432, %v374, 0
        %v647 = vsel %vm432, %v375, 0
        %v650 = vsel %vm432, %v376, 0
        %v653 = vsel %vm432, %v377, 0
        %v656 = vsel %vm432, %v378, 0
        %v659 = vsel %vm432, %v379, 0
        %v662 = vsel %vm432, %v380, 0
        %v665 = vsel %vm432, %v381, 0
        %v668 = vsel %vm432, %v382, 0
        %v671 = vsel %vm432, %v383, 0
        %v674 = vsel %vm432, %v384, 0
        %v677 = vsel %vm432, %v385, 0
        %v680 = vsel %vm432, %v386, 0
        %v683 = vsel %vm432, %v387, 0
        %v686 = vsel %vm432, %v388, 0
        %v689 = vsel %vm432, %v389, 0
        %v692 = vsel %vm432, %v390, 0
        %v695 = vsel %vm432, %v391, 0
        %v698 = vsel %vm432, %v392, 0
        %v701 = vsel %vm432, %v393, 0
        %v704 = vsel %vm432, %v394, 0
        %v707 = vsel %vm432, %v395, 0
        %v710 = vsel %vm432, %v396, 0
        %v713 = vsel %vm432, %v397, 0
        %v716 = vsel %vm432, %v398, 0
        %v719 = vsel %vm432, %v399, 0
        %v722 = vsel %vm432, %v400, 0
        %v725 = vsel %vm432, %v401, 0
        %v728 = vsel %vm432, %v402, 0
        %v731 = vsel %vm432, %v403, 0
        %v734 = vsel %vm432, %v404, 0
        %v737 = vsel %vm432, %v405, 0
        %v740 = vsel %vm432, %v406, 0
        %v743 = vsel %vm432, %v407, 0
        %v746 = vsel %vm432, %v408, 0
        %v749 = vsel %vm432, %v409, 0
        %v752 = vsel %vm432, %v410, 0
        %v755 = vsel %vm432, %v411, 0
        %v758 = vsel %vm432, %v412, 0
        %v761 = vsel %vm432, %v413, 0
        %v764 = vsel %vm432, %v414, 0
        %v767 = vsel %vm432, %v415, 0
        %v770 = vsel %vm432, %v416, 0
        %v773 = vsel %vm432, %v417, 0
        %775 = vmatprep.subr.mxu0 0.0
        %776 = vmatpush1.xpose.msra.mxu0 %v440
        %777 = vmatprep.subr.mxu0 0.0
        %778 = vmatpush1.xpose.msra.mxu0 %v443
        %779 = vmatprep.subr.mxu0 0.0
        %780 = vmatpush1.xpose.msra.mxu0 %v446
        %781 = vmatprep.subr.mxu0 0.0
        %782 = vmatpush1.xpose.msra.mxu0 %v449
        %783 = vmatprep.subr.mxu0 0.0
        %784 = vmatpush1.xpose.msra.mxu0 %v452
        %785 = vmatprep.subr.mxu0 0.0
        %786 = vmatpush1.xpose.msra.mxu0 %v455
        %787 = vmatprep.subr.mxu0 0.0
        %788 = vmatpush1.xpose.msra.mxu0 %v458
        %789 = vmatprep.subr.mxu0 0.0
        %790 = vmatpush1.xpose.msra.mxu0 %v461
        %791 = vmatprep.subr.mxu0 0.0
        %792 = vmatpush1.xpose.msra.mxu0 %v464
        %793 = vmatprep.subr.mxu0 0.0
        %794 = vmatpush1.xpose.msra.mxu0 %v467
        %795 = vmatprep.subr.mxu0 0.0
        %796 = vmatpush1.xpose.msra.mxu0 %v470
        %797 = vmatprep.subr.mxu0 0.0
        %798 = vmatpush1.xpose.msra.mxu0 %v473
        %799 = vmatprep.subr.mxu0 0.0
        %800 = vmatpush1.xpose.msra.mxu0 %v476
        %801 = vmatprep.subr.mxu0 0.0
        %802 = vmatpush1.xpose.msra.mxu0 %v479
        %803 = vmatprep.subr.mxu0 0.0
        %804 = vmatpush1.xpose.msra.mxu0 %v482
        %805 = vmatprep.subr.mxu0 0.0
        %806 = vmatpush1.xpose.msra.mxu0 %v485
        %807 = vmatprep.subr.mxu0 0.0
        %808 = vmatpush1.xpose.msra.mxu0 %v488
        %809 = vmatprep.subr.mxu0 0.0
        %810 = vmatpush1.xpose.msra.mxu0 %v491
        %811 = vmatprep.subr.mxu0 0.0
        %812 = vmatpush1.xpose.msra.mxu0 %v494
        %813 = vmatprep.subr.mxu0 0.0
        %814 = vmatpush1.xpose.msra.mxu0 %v497
        %815 = vmatprep.subr.mxu0 0.0
        %816 = vmatpush1.xpose.msra.mxu0 %v500
        %817 = vmatprep.subr.mxu0 0.0
        %818 = vmatpush1.xpose.msra.mxu0 %v503
        %819 = vmatprep.subr.mxu0 0.0
        %820 = vmatpush1.xpose.msra.mxu0 %v506
        %821 = vmatprep.subr.mxu0 0.0
        %822 = vmatpush1.xpose.msra.mxu0 %v509
        %823 = vmatprep.subr.mxu0 0.0
        %824 = vmatpush1.xpose.msra.mxu0 %v512
        %825 = vmatprep.subr.mxu0 0.0
        %826 = vmatpush1.xpose.msra.mxu0 %v515
        %827 = vmatprep.subr.mxu0 0.0
        %828 = vmatpush1.xpose.msra.mxu0 %v518
        %829 = vmatprep.subr.mxu0 0.0
        %830 = vmatpush1.xpose.msra.mxu0 %v521
        %831 = vmatprep.subr.mxu0 0.0
        %832 = vmatpush1.xpose.msra.mxu0 %v524
        %833 = vmatprep.subr.mxu0 0.0
        %834 = vmatpush1.xpose.msra.mxu0 %v527
        %835 = vmatprep.subr.mxu0 0.0
        %836 = vmatpush1.xpose.msra.mxu0 %v530
        %837 = vmatprep.subr.mxu0 0.0
        %838 = vmatpush1.xpose.msra.mxu0 %v533
        %839 = vmatprep.mubr.f32.mxu0 0.0
        %840 = vmatmul.mubr.f32.gmra.mrb[0].mxu0 %v434
        %v841 = vpop.f32.mrb[0].mxu0
        %v842 = vadd.f32 %v425, %v841
        %v843 = vpop.f32.mrb[0].mxu0
        %v844 = vadd.f32 %v425, %v843
        %845 = vmatprep.mubr.f32.mxu0 0.0
        %846 = vmatmul.mubr.f32.gmra.mrb[0].mxu0 %v437
        %v847 = vpop.f32.mrb[0].mxu0
        %v848 = vadd.f32 %v430, %v847
        %v849 = vpop.f32.mrb[0].mxu0
        %v850 = vadd.f32 %v430, %v849
        %851 = vdwg.mxu0
        %852 = vmatprep.subr.mxu0 0.0
        %853 = vmatpush1.xpose.msra.mxu0 %v536
        %854 = vmatprep.subr.mxu0 0.0
        %855 = vmatpush1.xpose.msra.mxu0 %v539
        %856 = vmatprep.subr.mxu0 0.0
        %857 = vmatpush1.xpose.msra.mxu0 %v542
        %858 = vmatprep.subr.mxu0 0.0
        %859 = vmatpush1.xpose.msra.mxu0 %v545
        %860 = vmatprep.subr.mxu0 0.0
        %861 = vmatpush1.xpose.msra.mxu0 %v548
        %862 = vmatprep.subr.mxu0 0.0
        %863 = vmatpush1.xpose.msra.mxu0 %v551
        %864 = vmatprep.subr.mxu0 0.0
        %865 = vmatpush1.xpose.msra.mxu0 %v554
        %866 = vmatprep.subr.mxu0 0.0
        %867 = vmatpush1.xpose.msra.mxu0 %v557
        %868 = vmatprep.subr.mxu0 0.0
        %869 = vmatpush1.xpose.msra.mxu0 %v560
        %870 = vmatprep.subr.mxu0 0.0
        %871 = vmatpush1.xpose.msra.mxu0 %v563
        %872 = vmatprep.subr.mxu0 0.0
        %873 = vmatpush1.xpose.msra.mxu0 %v566
        %874 = vmatprep.subr.mxu0 0.0
        %875 = vmatpush1.xpose.msra.mxu0 %v569
        %876 = vmatprep.subr.mxu0 0.0
        %877 = vmatpush1.xpose.msra.mxu0 %v572
        %878 = vmatprep.subr.mxu0 0.0
        %879 = vmatpush1.xpose.msra.mxu0 %v575
        %880 = vmatprep.subr.mxu0 0.0
        %881 = vmatpush1.xpose.msra.mxu0 %v578
        %882 = vmatprep.subr.mxu0 0.0
        %883 = vmatpush1.xpose.msra.mxu0 %v581
        %884 = vmatprep.subr.mxu0 0.0
        %885 = vmatpush1.xpose.msra.mxu0 %v584
        %886 = vmatprep.subr.mxu0 0.0
        %887 = vmatpush1.xpose.msra.mxu0 %v587
        %888 = vmatprep.subr.mxu0 0.0
        %889 = vmatpush1.xpose.msra.mxu0 %v590
        %890 = vmatprep.subr.mxu0 0.0
        %891 = vmatpush1.xpose.msra.mxu0 %v593
        %892 = vmatprep.subr.mxu0 0.0
        %893 = vmatpush1.xpose.msra.mxu0 %v596
        %894 = vmatprep.subr.mxu0 0.0
        %895 = vmatpush1.xpose.msra.mxu0 %v599
        %896 = vmatprep.subr.mxu0 0.0
        %897 = vmatpush1.xpose.msra.mxu0 %v602
        %898 = vmatprep.subr.mxu0 0.0
        %899 = vmatpush1.xpose.msra.mxu0 %v605
        %900 = vmatprep.subr.mxu0 0.0
        %901 = vmatpush1.xpose.msra.mxu0 %v608
        %902 = vmatprep.subr.mxu0 0.0
        %903 = vmatpush1.xpose.msra.mxu0 %v611
        %904 = vmatprep.subr.mxu0 0.0
        %905 = vmatpush1.xpose.msra.mxu0 %v614
        %906 = vmatprep.subr.mxu0 0.0
        %907 = vmatpush1.xpose.msra.mxu0 %v617
        %908 = vmatprep.subr.mxu0 0.0
        %909 = vmatpush1.xpose.msra.mxu0 %v620
        %910 = vmatprep.subr.mxu0 0.0
        %911 = vmatpush1.xpose.msra.mxu0 %v623
        %912 = vmatprep.subr.mxu0 0.0
        %913 = vmatpush1.xpose.msra.mxu0 %v626
        %914 = vmatprep.subr.mxu0 0.0
        %915 = vmatpush1.xpose.msra.mxu0 %v629
        %916 = vmatprep.mubr.f32.mxu0 0.0
        %917 = vmatmul.mubr.f32.gmra.mrb[0].mxu0 %v434
        %v918 = vpop.f32.mrb[0].mxu0
        %v919 = vadd.f32 %v425, %v918
        %v920 = vpop.f32.mrb[0].mxu0
        %v921 = vadd.f32 %v425, %v920
        %922 = vmatprep.mubr.f32.mxu0 0.0
        %923 = vmatmul.mubr.f32.gmra.mrb[0].mxu0 %v437
        %v924 = vpop.f32.mrb[0].mxu0
        %v925 = vadd.f32 %v430, %v924
        %v926 = vpop.f32.mrb[0].mxu0
        %v927 = vadd.f32 %v430, %v926
        %928 = vdwg.mxu0
        %929 = vmatprep.subr.mxu0 0.0
        %930 = vmatpush1.xpose.msra.mxu0 %v632
        %931 = vmatprep.subr.mxu0 0.0
        %932 = vmatpush1.xpose.msra.mxu0 %v635
        %933 = vmatprep.subr.mxu0 0.0
        %934 = vmatpush1.xpose.msra.mxu0 %v638
        %935 = vmatprep.subr.mxu0 0.0
        %936 = vmatpush1.xpose.msra.mxu0 %v641
        %937 = vmatprep.subr.mxu0 0.0
        %938 = vmatpush1.xpose.msra.mxu0 %v644
        %939 = vmatprep.subr.mxu0 0.0
        %940 = vmatpush1.xpose.msra.mxu0 %v647
        %941 = vmatprep.subr.mxu0 0.0
        %942 = vmatpush1.xpose.msra.mxu0 %v650
        %943 = vmatprep.subr.mxu0 0.0
        %944 = vmatpush1.xpose.msra.mxu0 %v653
        %945 = vmatprep.subr.mxu0 0.0
        %946 = vmatpush1.xpose.msra.mxu0 %v656
        %947 = vmatprep.subr.mxu0 0.0
        %948 = vmatpush1.xpose.msra.mxu0 %v659
        %949 = vmatprep.subr.mxu0 0.0
        %950 = vmatpush1.xpose.msra.mxu0 %v662
        %951 = vmatprep.subr.mxu0 0.0
        %952 = vmatpush1.xpose.msra.mxu0 %v665
        %953 = vmatprep.subr.mxu0 0.0
        %954 = vmatpush1.xpose.msra.mxu0 %v668
        %955 = vmatprep.subr.mxu0 0.0
        %956 = vmatpush1.xpose.msra.mxu0 %v671
        %957 = vmatprep.subr.mxu0 0.0
        %958 = vmatpush1.xpose.msra.mxu0 %v674
        %959 = vmatprep.subr.mxu0 0.0
        %960 = vmatpush1.xpose.msra.mxu0 %v677
        %961 = vmatprep.subr.mxu0 0.0
        %962 = vmatpush1.xpose.msra.mxu0 %v680
        %963 = vmatprep.subr.mxu0 0.0
        %964 = vmatpush1.xpose.msra.mxu0 %v683
        %965 = vmatprep.subr.mxu0 0.0
        %966 = vmatpush1.xpose.msra.mxu0 %v686
        %967 = vmatprep.subr.mxu0 0.0
        %968 = vmatpush1.xpose.msra.mxu0 %v689
        %969 = vmatprep.subr.mxu0 0.0
        %970 = vmatpush1.xpose.msra.mxu0 %v692
        %971 = vmatprep.subr.mxu0 0.0
        %972 = vmatpush1.xpose.msra.mxu0 %v695
        %973 = vmatprep.subr.mxu0 0.0
        %974 = vmatpush1.xpose.msra.mxu0 %v698
        %975 = vmatprep.subr.mxu0 0.0
        %976 = vmatpush1.xpose.msra.mxu0 %v701
        %977 = vmatprep.subr.mxu0 0.0
        %978 = vmatpush1.xpose.msra.mxu0 %v704
        %979 = vmatprep.subr.mxu0 0.0
        %980 = vmatpush1.xpose.msra.mxu0 %v707
        %981 = vmatprep.subr.mxu0 0.0
        %982 = vmatpush1.xpose.msra.mxu0 %v710
        %983 = vmatprep.subr.mxu0 0.0
        %984 = vmatpush1.xpose.msra.mxu0 %v713
        %985 = vmatprep.subr.mxu0 0.0
        %986 = vmatpush1.xpose.msra.mxu0 %v716
        %987 = vmatprep.subr.mxu0 0.0
        %988 = vmatpush1.xpose.msra.mxu0 %v719
        %989 = vmatprep.subr.mxu0 0.0
        %990 = vmatpush1.xpose.msra.mxu0 %v722
        %991 = vmatprep.subr.mxu0 0.0
        %992 = vmatpush1.xpose.msra.mxu0 %v725
        %993 = vmatprep.mubr.f32.mxu0 0.0
        %994 = vmatmul.mubr.f32.gmra.mrb[0].mxu0 %v434
        %v995 = vpop.f32.mrb[0].mxu0
        %v996 = vadd.f32 %v425, %v995
        %v997 = vpop.f32.mrb[0].mxu0
        %v998 = vadd.f32 %v425, %v997
        %999 = vmatprep.mubr.f32.mxu0 0.0
        %1000 = vmatmul.mubr.f32.gmra.mrb[0].mxu0 %v437
        %v1001 = vpop.f32.mrb[0].mxu0
        %v1002 = vadd.f32 %v430, %v1001
        %v1003 = vpop.f32.mrb[0].mxu0
        %v1004 = vadd.f32 %v430, %v1003
        %1005 = vdwg.mxu0
        %1006 = vmatprep.subr.mxu0 0.0
        %1007 = vmatpush1.xpose.msra.mxu0 %v728
        %1008 = vmatprep.subr.mxu0 0.0
        %1009 = vmatpush1.xpose.msra.mxu0 %v731
        %1010 = vmatprep.subr.mxu0 0.0
        %1011 = vmatpush1.xpose.msra.mxu0 %v734
        %1012 = vmatprep.subr.mxu0 0.0
        %1013 = vmatpush1.xpose.msra.mxu0 %v737
        %1014 = vmatprep.subr.mxu0 0.0
        %1015 = vmatpush1.xpose.msra.mxu0 %v740
        %1016 = vmatprep.subr.mxu0 0.0
        %1017 = vmatpush1.xpose.msra.mxu0 %v743
        %1018 = vmatprep.subr.mxu0 0.0
        %1019 = vmatpush1.xpose.msra.mxu0 %v746
        %1020 = vmatprep.subr.mxu0 0.0
        %1021 = vmatpush1.xpose.msra.mxu0 %v749
        %1022 = vmatprep.subr.mxu0 0.0
        %1023 = vmatpush1.xpose.msra.mxu0 %v752
        %1024 = vmatprep.subr.mxu0 0.0
        %1025 = vmatpush1.xpose.msra.mxu0 %v755
        %1026 = vmatprep.subr.mxu0 0.0
        %1027 = vmatpush1.xpose.msra.mxu0 %v758
        %1028 = vmatprep.subr.mxu0 0.0
        %1029 = vmatpush1.xpose.msra.mxu0 %v761
        %1030 = vmatprep.subr.mxu0 0.0
        %1031 = vmatpush1.xpose.msra.mxu0 %v764
        %1032 = vmatprep.subr.mxu0 0.0
        %1033 = vmatpush1.xpose.msra.mxu0 %v767
        %1034 = vmatprep.subr.mxu0 0.0
        %1035 = vmatpush1.xpose.msra.mxu0 %v770
        %1036 = vmatprep.subr.mxu0 0.0
        %1037 = vmatpush1.xpose.msra.mxu0 %v773
        %1038 = vmatprep.subr.mxu0 0.0
        %1039 = vmatpush1.xpose.msra.mxu0 0.0
        %1040 = vmatprep.subr.mxu0 0.0
        %1041 = vmatpush1.xpose.msra.mxu0 0.0
        %1042 = vmatprep.subr.mxu0 0.0
        %1043 = vmatpush1.xpose.msra.mxu0 0.0
        %1044 = vmatprep.subr.mxu0 0.0
        %1045 = vmatpush1.xpose.msra.mxu0 0.0
        %1046 = vmatprep.subr.mxu0 0.0
        %1047 = vmatpush1.xpose.msra.mxu0 0.0
        %1048 = vmatprep.subr.mxu0 0.0
        %1049 = vmatpush1.xpose.msra.mxu0 0.0
        %1050 = vmatprep.subr.mxu0 0.0
        %1051 = vmatpush1.xpose.msra.mxu0 0.0
        %1052 = vmatprep.subr.mxu0 0.0
        %1053 = vmatpush1.xpose.msra.mxu0 0.0
        %1054 = vmatprep.subr.mxu0 0.0
        %1055 = vmatpush1.xpose.msra.mxu0 0.0
        %1056 = vmatprep.subr.mxu0 0.0
        %1057 = vmatpush1.xpose.msra.mxu0 0.0
        %1058 = vmatprep.subr.mxu0 0.0
        %1059 = vmatpush1.xpose.msra.mxu0 0.0
        %1060 = vmatprep.subr.mxu0 0.0
        %1061 = vmatpush1.xpose.msra.mxu0 0.0
        %1062 = vmatprep.subr.mxu0 0.0
        %1063 = vmatpush1.xpose.msra.mxu0 0.0
        %1064 = vmatprep.subr.mxu0 0.0
        %1065 = vmatpush1.xpose.msra.mxu0 0.0
        %1066 = vmatprep.subr.mxu0 0.0
        %1067 = vmatpush1.xpose.msra.mxu0 0.0
        %1068 = vmatprep.subr.mxu0 0.0
        %1069 = vmatpush1.xpose.msra.mxu0 0.0
        %1070 = vmatprep.mubr.f32.mxu0 0.0
        %1071 = vmatmul.mubr.f32.gmra.mrb[0].mxu0 %v434
        %v1072 = vpop.f32.mrb[0].mxu0
        %v1073 = vadd.f32 %v425, %v1072
        %v1074 = vpop.f32.mrb[0].mxu0
        %1075 = vmatprep.mubr.f32.mxu0 0.0
        %1076 = vmatmul.mubr.f32.gmra.mrb[0].mxu0 %v437
        %v1077 = vpop.f32.mrb[0].mxu0
        %v1078 = vadd.f32 %v430, %v1077
        %v1079 = vpop.f32.mrb[0].mxu0
        %1080 = vdwg.mxu0
        %v1081 = vmax.f32 %v842, 0.0
        %v1082 = vmax.f32 %v844, 0.0
        %v1083 = vmax.f32 %v919, 0.0
        %v1084 = vmax.f32 %v921, 0.0
        %v1085 = vmax.f32 %v996, 0.0
        %v1086 = vmax.f32 %v998, 0.0
        %v1087 = vmax.f32 %v1073, 0.0
        %v1088 = vmax.f32 %v848, 0.0
        %v1089 = vmax.f32 %v850, 0.0
        %v1090 = vmax.f32 %v925, 0.0
        %v1091 = vmax.f32 %v927, 0.0
        %v1092 = vmax.f32 %v1002, 0.0
        %v1093 = vmax.f32 %v1004, 0.0
        %v1094 = vmax.f32 %v1078, 0.0
        %v1095 = vld [vmem:[%s3] sm:$0xff]
        %v1096 = vld [vmem:[%s3 + $0x8] sm:$0xff]
        %v1097 = vld [vmem:[%s4] sm:$0xff]
        %v1098 = vld [vmem:[%s4 + $0x8] sm:$0xff]
        %1100 = vset.pattern.permute.xlu0 0
        %1101 = vperm.xlu0 %1100, %v1097
        %v1102 = vpop.permute.xlu0 %1101
        %1105 = vset.pattern.permute.xlu0 0
        %1106 = vperm.xlu0 %1105, %v1098
        %v1107 = vpop.permute.xlu0 %1106
        %vm1109 = vcmask 130048
        %v1111 = vsel %vm1109, %v1095, 0
        %v1114 = vsel %vm1109, %v1096, 0
        %1116 = vmatprep.subr.mxu0 %v1082
        %1117 = vmatpush1.msra.mxu0 %v1081
        %1118 = vmatprep.subr.mxu0 %v1089
        %1119 = vmatpush1.msra.mxu0 %v1088
        %1120 = vmatprep.subr.mxu0 0.0
        %1121 = vmatpush1.msra.mxu0 0.0
        %1122 = vmatprep.subr.mxu0 0.0
        %1123 = vmatpush1.msra.mxu0 0.0
        %1124 = vmatprep.subr.mxu0 0.0
        %1125 = vmatpush1.msra.mxu0 0.0
        %1126 = vmatprep.subr.mxu0 0.0
        %1127 = vmatpush1.msra.mxu0 0.0
        %1128 = vmatprep.subr.mxu0 0.0
        %1129 = vmatpush1.msra.mxu0 0.0
        %1130 = vmatprep.subr.mxu0 0.0
        %1131 = vmatpush1.msra.mxu0 0.0
        %1132 = vmatprep.subr.mxu0 0.0
        %1133 = vmatpush1.msra.mxu0 0.0
        %1134 = vmatprep.subr.mxu0 0.0
        %1135 = vmatpush1.msra.mxu0 0.0
        %1136 = vmatprep.subr.mxu0 0.0
        %1137 = vmatpush1.msra.mxu0 0.0
        %1138 = vmatprep.subr.mxu0 0.0
        %1139 = vmatpush1.msra.mxu0 0.0
        %1140 = vmatprep.subr.mxu0 0.0
        %1141 = vmatpush1.msra.mxu0 0.0
        %1142 = vmatprep.subr.mxu0 0.0
        %1143 = vmatpush1.msra.mxu0 0.0
        %1144 = vmatprep.subr.mxu0 0.0
        %1145 = vmatpush1.msra.mxu0 0.0
        %1146 = vmatprep.subr.mxu0 0.0
        %1147 = vmatpush1.msra.mxu0 0.0
        %1148 = vmatprep.subr.mxu0 0.0
        %1149 = vmatpush1.msra.mxu0 0.0
        %1150 = vmatprep.subr.mxu0 0.0
        %1151 = vmatpush1.msra.mxu0 0.0
        %1152 = vmatprep.subr.mxu0 0.0
        %1153 = vmatpush1.msra.mxu0 0.0
        %1154 = vmatprep.subr.mxu0 0.0
        %1155 = vmatpush1.msra.mxu0 0.0
        %1156 = vmatprep.subr.mxu0 0.0
        %1157 = vmatpush1.msra.mxu0 0.0
        %1158 = vmatprep.subr.mxu0 0.0
        %1159 = vmatpush1.msra.mxu0 0.0
        %1160 = vmatprep.subr.mxu0 0.0
        %1161 = vmatpush1.msra.mxu0 0.0
        %1162 = vmatprep.subr.mxu0 0.0
        %1163 = vmatpush1.msra.mxu0 0.0
        %1164 = vmatprep.subr.mxu0 0.0
        %1165 = vmatpush1.msra.mxu0 0.0
        %1166 = vmatprep.subr.mxu0 0.0
        %1167 = vmatpush1.msra.mxu0 0.0
        %1168 = vmatprep.subr.mxu0 0.0
        %1169 = vmatpush1.msra.mxu0 0.0
        %1170 = vmatprep.subr.mxu0 0.0
        %1171 = vmatpush1.msra.mxu0 0.0
        %1172 = vmatprep.subr.mxu0 0.0
        %1173 = vmatpush1.msra.mxu0 0.0
        %1174 = vmatprep.subr.mxu0 0.0
        %1175 = vmatpush1.msra.mxu0 0.0
        %1176 = vmatprep.subr.mxu0 0.0
        %1177 = vmatpush1.msra.mxu0 0.0
        %1178 = vmatprep.subr.mxu0 0.0
        %1179 = vmatpush1.msra.mxu0 0.0
        %1180 = vmatprep.mubr.f32.mxu0 0.0
        %1181 = vmatmul.mubr.f32.gmra.mrb[0].mxu0 %v1111
        %v1182 = vpop.f32.mrb[0].mxu0
        %v1183 = vadd.f32 %v1102, %v1182
        %v1184 = vpop.f32.mrb[0].mxu0
        %v1185 = vadd.f32 %v1102, %v1184
        %1186 = vmatprep.mubr.f32.mxu0 0.0
        %1187 = vmatmul.mubr.f32.gmra.mrb[0].mxu0 %v1114
        %v1188 = vpop.f32.mrb[0].mxu0
        %v1189 = vadd.f32 %v1107, %v1188
        %v1190 = vpop.f32.mrb[0].mxu0
        %v1191 = vadd.f32 %v1107, %v1190
        %1192 = vdwg.mxu0
        %1193 = vmatprep.subr.mxu0 %v1084
        %1194 = vmatpush1.msra.mxu0 %v1083
        %1195 = vmatprep.subr.mxu0 %v1091
        %1196 = vmatpush1.msra.mxu0 %v1090
        %1197 = vmatprep.subr.mxu0 0.0
        %1198 = vmatpush1.msra.mxu0 0.0
        %1199 = vmatprep.subr.mxu0 0.0
        %1200 = vmatpush1.msra.mxu0 0.0
        %1201 = vmatprep.subr.mxu0 0.0
        %1202 = vmatpush1.msra.mxu0 0.0
        %1203 = vmatprep.subr.mxu0 0.0
        %1204 = vmatpush1.msra.mxu0 0.0
        %1205 = vmatprep.subr.mxu0 0.0
        %1206 = vmatpush1.msra.mxu0 0.0
        %1207 = vmatprep.subr.mxu0 0.0
        %1208 = vmatpush1.msra.mxu0 0.0
        %1209 = vmatprep.subr.mxu0 0.0
        %1210 = vmatpush1.msra.mxu0 0.0
        %1211 = vmatprep.subr.mxu0 0.0
        %1212 = vmatpush1.msra.mxu0 0.0
        %1213 = vmatprep.subr.mxu0 0.0
        %1214 = vmatpush1.msra.mxu0 0.0
        %1215 = vmatprep.subr.mxu0 0.0
        %1216 = vmatpush1.msra.mxu0 0.0
        %1217 = vmatprep.subr.mxu0 0.0
        %1218 = vmatpush1.msra.mxu0 0.0
        %1219 = vmatprep.subr.mxu0 0.0
        %1220 = vmatpush1.msra.mxu0 0.0
        %1221 = vmatprep.subr.mxu0 0.0
        %1222 = vmatpush1.msra.mxu0 0.0
        %1223 = vmatprep.subr.mxu0 0.0
        %1224 = vmatpush1.msra.mxu0 0.0
        %1225 = vmatprep.subr.mxu0 0.0
        %1226 = vmatpush1.msra.mxu0 0.0
        %1227 = vmatprep.subr.mxu0 0.0
        %1228 = vmatpush1.msra.mxu0 0.0
        %1229 = vmatprep.subr.mxu0 0.0
        %1230 = vmatpush1.msra.mxu0 0.0
        %1231 = vmatprep.subr.mxu0 0.0
        %1232 = vmatpush1.msra.mxu0 0.0
        %1233 = vmatprep.subr.mxu0 0.0
        %1234 = vmatpush1.msra.mxu0 0.0
        %1235 = vmatprep.subr.mxu0 0.0
        %1236 = vmatpush1.msra.mxu0 0.0
        %1237 = vmatprep.subr.mxu0 0.0
        %1238 = vmatpush1.msra.mxu0 0.0
        %1239 = vmatprep.subr.mxu0 0.0
        %1240 = vmatpush1.msra.mxu0 0.0
        %1241 = vmatprep.subr.mxu0 0.0
        %1242 = vmatpush1.msra.mxu0 0.0
        %1243 = vmatprep.subr.mxu0 0.0
        %1244 = vmatpush1.msra.mxu0 0.0
        %1245 = vmatprep.subr.mxu0 0.0
        %1246 = vmatpush1.msra.mxu0 0.0
        %1247 = vmatprep.subr.mxu0 0.0
        %1248 = vmatpush1.msra.mxu0 0.0
        %1249 = vmatprep.subr.mxu0 0.0
        %1250 = vmatpush1.msra.mxu0 0.0
        %1251 = vmatprep.subr.mxu0 0.0
        %1252 = vmatpush1.msra.mxu0 0.0
        %1253 = vmatprep.subr.mxu0 0.0
        %1254 = vmatpush1.msra.mxu0 0.0
        %1255 = vmatprep.subr.mxu0 0.0
        %1256 = vmatpush1.msra.mxu0 0.0
        %1257 = vmatprep.mubr.f32.mxu0 0.0
        %1258 = vmatmul.mubr.f32.gmra.mrb[0].mxu0 %v1111
        %v1259 = vpop.f32.mrb[0].mxu0
        %v1260 = vadd.f32 %v1102, %v1259
        %v1261 = vpop.f32.mrb[0].mxu0
        %v1262 = vadd.f32 %v1102, %v1261
        %1263 = vmatprep.mubr.f32.mxu0 0.0
        %1264 = vmatmul.mubr.f32.gmra.mrb[0].mxu0 %v1114
        %v1265 = vpop.f32.mrb[0].mxu0
        %v1266 = vadd.f32 %v1107, %v1265
        %v1267 = vpop.f32.mrb[0].mxu0
        %v1268 = vadd.f32 %v1107, %v1267
        %1269 = vdwg.mxu0
        %1270 = vmatprep.subr.mxu0 %v1086
        %1271 = vmatpush1.msra.mxu0 %v1085
        %1272 = vmatprep.subr.mxu0 %v1093
        %1273 = vmatpush1.msra.mxu0 %v1092
        %1274 = vmatprep.subr.mxu0 0.0
        %1275 = vmatpush1.msra.mxu0 0.0
        %1276 = vmatprep.subr.mxu0 0.0
        %1277 = vmatpush1.msra.mxu0 0.0
        %1278 = vmatprep.subr.mxu0 0.0
        %1279 = vmatpush1.msra.mxu0 0.0
        %1280 = vmatprep.subr.mxu0 0.0
        %1281 = vmatpush1.msra.mxu0 0.0
        %1282 = vmatprep.subr.mxu0 0.0
        %1283 = vmatpush1.msra.mxu0 0.0
        %1284 = vmatprep.subr.mxu0 0.0
        %1285 = vmatpush1.msra.mxu0 0.0
        %1286 = vmatprep.subr.mxu0 0.0
        %1287 = vmatpush1.msra.mxu0 0.0
        %1288 = vmatprep.subr.mxu0 0.0
        %1289 = vmatpush1.msra.mxu0 0.0
        %1290 = vmatprep.subr.mxu0 0.0
        %1291 = vmatpush1.msra.mxu0 0.0
        %1292 = vmatprep.subr.mxu0 0.0
        %1293 = vmatpush1.msra.mxu0 0.0
        %1294 = vmatprep.subr.mxu0 0.0
        %1295 = vmatpush1.msra.mxu0 0.0
        %1296 = vmatprep.subr.mxu0 0.0
        %1297 = vmatpush1.msra.mxu0 0.0
        %1298 = vmatprep.subr.mxu0 0.0
        %1299 = vmatpush1.msra.mxu0 0.0
        %1300 = vmatprep.subr.mxu0 0.0
        %1301 = vmatpush1.msra.mxu0 0.0
        %1302 = vmatprep.subr.mxu0 0.0
        %1303 = vmatpush1.msra.mxu0 0.0
        %1304 = vmatprep.subr.mxu0 0.0
        %1305 = vmatpush1.msra.mxu0 0.0
        %1306 = vmatprep.subr.mxu0 0.0
        %1307 = vmatpush1.msra.mxu0 0.0
        %1308 = vmatprep.subr.mxu0 0.0
        %1309 = vmatpush1.msra.mxu0 0.0
        %1310 = vmatprep.subr.mxu0 0.0
        %1311 = vmatpush1.msra.mxu0 0.0
        %1312 = vmatprep.subr.mxu0 0.0
        %1313 = vmatpush1.msra.mxu0 0.0
        %1314 = vmatprep.subr.mxu0 0.0
        %1315 = vmatpush1.msra.mxu0 0.0
        %1316 = vmatprep.subr.mxu0 0.0
        %1317 = vmatpush1.msra.mxu0 0.0
        %1318 = vmatprep.subr.mxu0 0.0
        %1319 = vmatpush1.msra.mxu0 0.0
        %1320 = vmatprep.subr.mxu0 0.0
        %1321 = vmatpush1.msra.mxu0 0.0
        %1322 = vmatprep.subr.mxu0 0.0
        %1323 = vmatpush1.msra.mxu0 0.0
        %1324 = vmatprep.subr.mxu0 0.0
        %1325 = vmatpush1.msra.mxu0 0.0
        %1326 = vmatprep.subr.mxu0 0.0
        %1327 = vmatpush1.msra.mxu0 0.0
        %1328 = vmatprep.subr.mxu0 0.0
        %1329 = vmatpush1.msra.mxu0 0.0
        %1330 = vmatprep.subr.mxu0 0.0
        %1331 = vmatpush1.msra.mxu0 0.0
        %1332 = vmatprep.subr.mxu0 0.0
        %1333 = vmatpush1.msra.mxu0 0.0
        %1334 = vmatprep.mubr.f32.mxu0 0.0
        %1335 = vmatmul.mubr.f32.gmra.mrb[0].mxu0 %v1111
        %v1336 = vpop.f32.mrb[0].mxu0
        %v1337 = vadd.f32 %v1102, %v1336
        %v1338 = vpop.f32.mrb[0].mxu0
        %v1339 = vadd.f32 %v1102, %v1338
        %1340 = vmatprep.mubr.f32.mxu0 0.0
        %1341 = vmatmul.mubr.f32.gmra.mrb[0].mxu0 %v1114
        %v1342 = vpop.f32.mrb[0].mxu0
        %v1343 = vadd.f32 %v1107, %v1342
        %v1344 = vpop.f32.mrb[0].mxu0
        %v1345 = vadd.f32 %v1107, %v1344
        %1346 = vdwg.mxu0
        %1347 = vmatprep.subr.mxu0 0.0
        %1348 = vmatpush1.msra.mxu0 %v1087
        %1349 = vmatprep.subr.mxu0 0.0
        %1350 = vmatpush1.msra.mxu0 %v1094
        %1351 = vmatprep.subr.mxu0 0.0
        %1352 = vmatpush1.msra.mxu0 0.0
        %1353 = vmatprep.subr.mxu0 0.0
        %1354 = vmatpush1.msra.mxu0 0.0
        %1355 = vmatprep.subr.mxu0 0.0
        %1356 = vmatpush1.msra.mxu0 0.0
        %1357 = vmatprep.subr.mxu0 0.0
        %1358 = vmatpush1.msra.mxu0 0.0
        %1359 = vmatprep.subr.mxu0 0.0
        %1360 = vmatpush1.msra.mxu0 0.0
        %1361 = vmatprep.subr.mxu0 0.0
        %1362 = vmatpush1.msra.mxu0 0.0
        %1363 = vmatprep.subr.mxu0 0.0
        %1364 = vmatpush1.msra.mxu0 0.0
        %1365 = vmatprep.subr.mxu0 0.0
        %1366 = vmatpush1.msra.mxu0 0.0
        %1367 = vmatprep.subr.mxu0 0.0
        %1368 = vmatpush1.msra.mxu0 0.0
        %1369 = vmatprep.subr.mxu0 0.0
        %1370 = vmatpush1.msra.mxu0 0.0
        %1371 = vmatprep.subr.mxu0 0.0
        %1372 = vmatpush1.msra.mxu0 0.0
        %1373 = vmatprep.subr.mxu0 0.0
        %1374 = vmatpush1.msra.mxu0 0.0
        %1375 = vmatprep.subr.mxu0 0.0
        %1376 = vmatpush1.msra.mxu0 0.0
        %1377 = vmatprep.subr.mxu0 0.0
        %1378 = vmatpush1.msra.mxu0 0.0
        %1379 = vmatprep.subr.mxu0 0.0
        %1380 = vmatpush1.msra.mxu0 0.0
        %1381 = vmatprep.subr.mxu0 0.0
        %1382 = vmatpush1.msra.mxu0 0.0
        %1383 = vmatprep.subr.mxu0 0.0
        %1384 = vmatpush1.msra.mxu0 0.0
        %1385 = vmatprep.subr.mxu0 0.0
        %1386 = vmatpush1.msra.mxu0 0.0
        %1387 = vmatprep.subr.mxu0 0.0
        %1388 = vmatpush1.msra.mxu0 0.0
        %1389 = vmatprep.subr.mxu0 0.0
        %1390 = vmatpush1.msra.mxu0 0.0
        %1391 = vmatprep.subr.mxu0 0.0
        %1392 = vmatpush1.msra.mxu0 0.0
        %1393 = vmatprep.subr.mxu0 0.0
        %1394 = vmatpush1.msra.mxu0 0.0
        %1395 = vmatprep.subr.mxu0 0.0
        %1396 = vmatpush1.msra.mxu0 0.0
        %1397 = vmatprep.subr.mxu0 0.0
        %1398 = vmatpush1.msra.mxu0 0.0
        %1399 = vmatprep.subr.mxu0 0.0
        %1400 = vmatpush1.msra.mxu0 0.0
        %1401 = vmatprep.subr.mxu0 0.0
        %1402 = vmatpush1.msra.mxu0 0.0
        %1403 = vmatprep.subr.mxu0 0.0
        %1404 = vmatpush1.msra.mxu0 0.0
        %1405 = vmatprep.subr.mxu0 0.0
        %1406 = vmatpush1.msra.mxu0 0.0
        %1407 = vmatprep.subr.mxu0 0.0
        %1408 = vmatpush1.msra.mxu0 0.0
        %1409 = vmatprep.subr.mxu0 0.0
        %1410 = vmatpush1.msra.mxu0 0.0
        %1411 = vmatprep.mubr.f32.mxu0 0.0
        %1412 = vmatmul.mubr.f32.gmra.mrb[0].mxu0 %v1111
        %v1413 = vpop.f32.mrb[0].mxu0
        %v1414 = vadd.f32 %v1102, %v1413
        %v1415 = vpop.f32.mrb[0].mxu0
        %1416 = vmatprep.mubr.f32.mxu0 0.0
        %1417 = vmatmul.mubr.f32.gmra.mrb[0].mxu0 %v1114
        %v1418 = vpop.f32.mrb[0].mxu0
        %v1419 = vadd.f32 %v1107, %v1418
        %v1420 = vpop.f32.mrb[0].mxu0
        %1421 = vdwg.mxu0
        %v1422 = vmax.f32 %v1183, 0.0
        %v1423 = vmax.f32 %v1185, 0.0
        %v1424 = vmax.f32 %v1260, 0.0
        %v1425 = vmax.f32 %v1262, 0.0
        %v1426 = vmax.f32 %v1337, 0.0
        %v1427 = vmax.f32 %v1339, 0.0
        %v1428 = vmax.f32 %v1414, 0.0
        %v1429 = vmax.f32 %v1189, 0.0
        %v1430 = vmax.f32 %v1191, 0.0
        %v1431 = vmax.f32 %v1266, 0.0
        %v1432 = vmax.f32 %v1268, 0.0
        %v1433 = vmax.f32 %v1343, 0.0
        %v1434 = vmax.f32 %v1345, 0.0
        %v1435 = vmax.f32 %v1419, 0.0
        %v1436 = vld [vmem:[%s5] sm:$0x1]
        %v1437 = vld [vmem:[#allocation2] sm:$0x1]
        %1439 = vset.pattern.permute.xlu0 0
        %1440 = vperm.xlu0 %1439, %v1437
        %v1441 = vpop.permute.xlu0 %1440
        %v1443 = vlaneseq
        %v1444 = vshrl.u32 %v1443, 7
        %v1445 = vsub.s32 0, %v1444
        %v1446 = vrot.slane %v1441, %v1445
        %v1448 = vsel %vm1109, %v1436, 0
        %1450 = vmatprep.subr.mxu0 %v1423
        %1451 = vmatpush1.msra.mxu0 %v1422
        %1452 = vmatprep.subr.mxu0 %v1430
        %1453 = vmatpush1.msra.mxu0 %v1429
        %1454 = vmatprep.subr.mxu0 0.0
        %1455 = vmatpush1.msra.mxu0 0.0
        %1456 = vmatprep.subr.mxu0 0.0
        %1457 = vmatpush1.msra.mxu0 0.0
        %1458 = vmatprep.subr.mxu0 0.0
        %1459 = vmatpush1.msra.mxu0 0.0
        %1460 = vmatprep.subr.mxu0 0.0
        %1461 = vmatpush1.msra.mxu0 0.0
        %1462 = vmatprep.subr.mxu0 0.0
        %1463 = vmatpush1.msra.mxu0 0.0
        %1464 = vmatprep.subr.mxu0 0.0
        %1465 = vmatpush1.msra.mxu0 0.0
        %1466 = vmatprep.subr.mxu0 0.0
        %1467 = vmatpush1.msra.mxu0 0.0
        %1468 = vmatprep.subr.mxu0 0.0
        %1469 = vmatpush1.msra.mxu0 0.0
        %1470 = vmatprep.subr.mxu0 0.0
        %1471 = vmatpush1.msra.mxu0 0.0
        %1472 = vmatprep.subr.mxu0 0.0
        %1473 = vmatpush1.msra.mxu0 0.0
        %1474 = vmatprep.subr.mxu0 0.0
        %1475 = vmatpush1.msra.mxu0 0.0
        %1476 = vmatprep.subr.mxu0 0.0
        %1477 = vmatpush1.msra.mxu0 0.0
        %1478 = vmatprep.subr.mxu0 0.0
        %1479 = vmatpush1.msra.mxu0 0.0
        %1480 = vmatprep.subr.mxu0 0.0
        %1481 = vmatpush1.msra.mxu0 0.0
        %1482 = vmatprep.subr.mxu0 0.0
        %1483 = vmatpush1.msra.mxu0 0.0
        %1484 = vmatprep.subr.mxu0 0.0
        %1485 = vmatpush1.msra.mxu0 0.0
        %1486 = vmatprep.subr.mxu0 0.0
        %1487 = vmatpush1.msra.mxu0 0.0
        %1488 = vmatprep.subr.mxu0 0.0
        %1489 = vmatpush1.msra.mxu0 0.0
        %1490 = vmatprep.subr.mxu0 0.0
        %1491 = vmatpush1.msra.mxu0 0.0
        %1492 = vmatprep.subr.mxu0 0.0
        %1493 = vmatpush1.msra.mxu0 0.0
        %1494 = vmatprep.subr.mxu0 0.0
        %1495 = vmatpush1.msra.mxu0 0.0
        %1496 = vmatprep.subr.mxu0 0.0
        %1497 = vmatpush1.msra.mxu0 0.0
        %1498 = vmatprep.subr.mxu0 0.0
        %1499 = vmatpush1.msra.mxu0 0.0
        %1500 = vmatprep.subr.mxu0 0.0
        %1501 = vmatpush1.msra.mxu0 0.0
        %1502 = vmatprep.subr.mxu0 0.0
        %1503 = vmatpush1.msra.mxu0 0.0
        %1504 = vmatprep.subr.mxu0 0.0
        %1505 = vmatpush1.msra.mxu0 0.0
        %1506 = vmatprep.subr.mxu0 0.0
        %1507 = vmatpush1.msra.mxu0 0.0
        %1508 = vmatprep.subr.mxu0 0.0
        %1509 = vmatpush1.msra.mxu0 0.0
        %1510 = vmatprep.subr.mxu0 0.0
        %1511 = vmatpush1.msra.mxu0 0.0
        %1512 = vmatprep.subr.mxu0 0.0
        %1513 = vmatpush1.msra.mxu0 0.0
        %1514 = vmatprep.mubr.f32.mxu0 0.0
        %1515 = vmatmul.mubr.f32.gmra.mrb[0].mxu0 %v1448
        %v1516 = vpop.f32.mrb[0].mxu0
        %v1517 = vadd.f32 %v1446, %v1516
        %v1518 = vpop.f32.mrb[0].mxu0
        %v1519 = vadd.f32 %v1446, %v1518
        %1520 = vdwg.mxu0
        %1521 = vmatprep.subr.mxu0 %v1425
        %1522 = vmatpush1.msra.mxu0 %v1424
        %1523 = vmatprep.subr.mxu0 %v1432
        %1524 = vmatpush1.msra.mxu0 %v1431
        %1525 = vmatprep.subr.mxu0 0.0
        %1526 = vmatpush1.msra.mxu0 0.0
        %1527 = vmatprep.subr.mxu0 0.0
        %1528 = vmatpush1.msra.mxu0 0.0
        %1529 = vmatprep.subr.mxu0 0.0
        %1530 = vmatpush1.msra.mxu0 0.0
        %1531 = vmatprep.subr.mxu0 0.0
        %1532 = vmatpush1.msra.mxu0 0.0
        %1533 = vmatprep.subr.mxu0 0.0
        %1534 = vmatpush1.msra.mxu0 0.0
        %1535 = vmatprep.subr.mxu0 0.0
        %1536 = vmatpush1.msra.mxu0 0.0
        %1537 = vmatprep.subr.mxu0 0.0
        %1538 = vmatpush1.msra.mxu0 0.0
        %1539 = vmatprep.subr.mxu0 0.0
        %1540 = vmatpush1.msra.mxu0 0.0
        %1541 = vmatprep.subr.mxu0 0.0
        %1542 = vmatpush1.msra.mxu0 0.0
        %1543 = vmatprep.subr.mxu0 0.0
        %1544 = vmatpush1.msra.mxu0 0.0
        %1545 = vmatprep.subr.mxu0 0.0
        %1546 = vmatpush1.msra.mxu0 0.0
        %1547 = vmatprep.subr.mxu0 0.0
        %1548 = vmatpush1.msra.mxu0 0.0
        %1549 = vmatprep.subr.mxu0 0.0
        %1550 = vmatpush1.msra.mxu0 0.0
        %1551 = vmatprep.subr.mxu0 0.0
        %1552 = vmatpush1.msra.mxu0 0.0
        %1553 = vmatprep.subr.mxu0 0.0
        %1554 = vmatpush1.msra.mxu0 0.0
        %1555 = vmatprep.subr.mxu0 0.0
        %1556 = vmatpush1.msra.mxu0 0.0
        %1557 = vmatprep.subr.mxu0 0.0
        %1558 = vmatpush1.msra.mxu0 0.0
        %1559 = vmatprep.subr.mxu0 0.0
        %1560 = vmatpush1.msra.mxu0 0.0
        %1561 = vmatprep.subr.mxu0 0.0
        %1562 = vmatpush1.msra.mxu0 0.0
        %1563 = vmatprep.subr.mxu0 0.0
        %1564 = vmatpush1.msra.mxu0 0.0
        %1565 = vmatprep.subr.mxu0 0.0
        %1566 = vmatpush1.msra.mxu0 0.0
        %1567 = vmatprep.subr.mxu0 0.0
        %1568 = vmatpush1.msra.mxu0 0.0
        %1569 = vmatprep.subr.mxu0 0.0
        %1570 = vmatpush1.msra.mxu0 0.0
        %1571 = vmatprep.subr.mxu0 0.0
        %1572 = vmatpush1.msra.mxu0 0.0
        %1573 = vmatprep.subr.mxu0 0.0
        %1574 = vmatpush1.msra.mxu0 0.0
        %1575 = vmatprep.subr.mxu0 0.0
        %1576 = vmatpush1.msra.mxu0 0.0
        %1577 = vmatprep.subr.mxu0 0.0
        %1578 = vmatpush1.msra.mxu0 0.0
        %1579 = vmatprep.subr.mxu0 0.0
        %1580 = vmatpush1.msra.mxu0 0.0
        %1581 = vmatprep.subr.mxu0 0.0
        %1582 = vmatpush1.msra.mxu0 0.0
        %1583 = vmatprep.subr.mxu0 0.0
        %1584 = vmatpush1.msra.mxu0 0.0
        %1585 = vmatprep.mubr.f32.mxu0 0.0
        %1586 = vmatmul.mubr.f32.gmra.mrb[0].mxu0 %v1448
        %v1587 = vpop.f32.mrb[0].mxu0
        %v1588 = vadd.f32 %v1446, %v1587
        %v1589 = vpop.f32.mrb[0].mxu0
        %v1590 = vadd.f32 %v1446, %v1589
        %1591 = vdwg.mxu0
        %1592 = vmatprep.subr.mxu0 %v1427
        %1593 = vmatpush1.msra.mxu0 %v1426
        %1594 = vmatprep.subr.mxu0 %v1434
        %1595 = vmatpush1.msra.mxu0 %v1433
        %1596 = vmatprep.subr.mxu0 0.0
        %1597 = vmatpush1.msra.mxu0 0.0
        %1598 = vmatprep.subr.mxu0 0.0
        %1599 = vmatpush1.msra.mxu0 0.0
        %1600 = vmatprep.subr.mxu0 0.0
        %1601 = vmatpush1.msra.mxu0 0.0
        %1602 = vmatprep.subr.mxu0 0.0
        %1603 = vmatpush1.msra.mxu0 0.0
        %1604 = vmatprep.subr.mxu0 0.0
        %1605 = vmatpush1.msra.mxu0 0.0
        %1606 = vmatprep.subr.mxu0 0.0
        %1607 = vmatpush1.msra.mxu0 0.0
        %1608 = vmatprep.subr.mxu0 0.0
        %1609 = vmatpush1.msra.mxu0 0.0
        %1610 = vmatprep.subr.mxu0 0.0
        %1611 = vmatpush1.msra.mxu0 0.0
        %1612 = vmatprep.subr.mxu0 0.0
        %1613 = vmatpush1.msra.mxu0 0.0
        %1614 = vmatprep.subr.mxu0 0.0
        %1615 = vmatpush1.msra.mxu0 0.0
        %1616 = vmatprep.subr.mxu0 0.0
        %1617 = vmatpush1.msra.mxu0 0.0
        %1618 = vmatprep.subr.mxu0 0.0
        %1619 = vmatpush1.msra.mxu0 0.0
        %1620 = vmatprep.subr.mxu0 0.0
        %1621 = vmatpush1.msra.mxu0 0.0
        %1622 = vmatprep.subr.mxu0 0.0
        %1623 = vmatpush1.msra.mxu0 0.0
        %1624 = vmatprep.subr.mxu0 0.0
        %1625 = vmatpush1.msra.mxu0 0.0
        %1626 = vmatprep.subr.mxu0 0.0
        %1627 = vmatpush1.msra.mxu0 0.0
        %1628 = vmatprep.subr.mxu0 0.0
        %1629 = vmatpush1.msra.mxu0 0.0
        %1630 = vmatprep.subr.mxu0 0.0
        %1631 = vmatpush1.msra.mxu0 0.0
        %1632 = vmatprep.subr.mxu0 0.0
        %1633 = vmatpush1.msra.mxu0 0.0
        %1634 = vmatprep.subr.mxu0 0.0
        %1635 = vmatpush1.msra.mxu0 0.0
        %1636 = vmatprep.subr.mxu0 0.0
        %1637 = vmatpush1.msra.mxu0 0.0
        %1638 = vmatprep.subr.mxu0 0.0
        %1639 = vmatpush1.msra.mxu0 0.0
        %1640 = vmatprep.subr.mxu0 0.0
        %1641 = vmatpush1.msra.mxu0 0.0
        %1642 = vmatprep.subr.mxu0 0.0
        %1643 = vmatpush1.msra.mxu0 0.0
        %1644 = vmatprep.subr.mxu0 0.0
        %1645 = vmatpush1.msra.mxu0 0.0
        %1646 = vmatprep.subr.mxu0 0.0
        %1647 = vmatpush1.msra.mxu0 0.0
        %1648 = vmatprep.subr.mxu0 0.0
        %1649 = vmatpush1.msra.mxu0 0.0
        %1650 = vmatprep.subr.mxu0 0.0
        %1651 = vmatpush1.msra.mxu0 0.0
        %1652 = vmatprep.subr.mxu0 0.0
        %1653 = vmatpush1.msra.mxu0 0.0
        %1654 = vmatprep.subr.mxu0 0.0
        %1655 = vmatpush1.msra.mxu0 0.0
        %1656 = vmatprep.mubr.f32.mxu0 0.0
        %1657 = vmatmul.mubr.f32.gmra.mrb[0].mxu0 %v1448
        %v1658 = vpop.f32.mrb[0].mxu0
        %v1659 = vadd.f32 %v1446, %v1658
        %v1660 = vpop.f32.mrb[0].mxu0
        %v1661 = vadd.f32 %v1446, %v1660
        %1662 = vdwg.mxu0
        %1663 = vmatprep.subr.mxu0 0.0
        %1664 = vmatpush1.msra.mxu0 %v1428
        %1665 = vmatprep.subr.mxu0 0.0
        %1666 = vmatpush1.msra.mxu0 %v1435
        %1667 = vmatprep.subr.mxu0 0.0
        %1668 = vmatpush1.msra.mxu0 0.0
        %1669 = vmatprep.subr.mxu0 0.0
        %1670 = vmatpush1.msra.mxu0 0.0
        %1671 = vmatprep.subr.mxu0 0.0
        %1672 = vmatpush1.msra.mxu0 0.0
        %1673 = vmatprep.subr.mxu0 0.0
        %1674 = vmatpush1.msra.mxu0 0.0
        %1675 = vmatprep.subr.mxu0 0.0
        %1676 = vmatpush1.msra.mxu0 0.0
        %1677 = vmatprep.subr.mxu0 0.0
        %1678 = vmatpush1.msra.mxu0 0.0
        %1679 = vmatprep.subr.mxu0 0.0
        %1680 = vmatpush1.msra.mxu0 0.0
        %1681 = vmatprep.subr.mxu0 0.0
        %1682 = vmatpush1.msra.mxu0 0.0
        %1683 = vmatprep.subr.mxu0 0.0
        %1684 = vmatpush1.msra.mxu0 0.0
        %1685 = vmatprep.subr.mxu0 0.0
        %1686 = vmatpush1.msra.mxu0 0.0
        %1687 = vmatprep.subr.mxu0 0.0
        %1688 = vmatpush1.msra.mxu0 0.0
        %1689 = vmatprep.subr.mxu0 0.0
        %1690 = vmatpush1.msra.mxu0 0.0
        %1691 = vmatprep.subr.mxu0 0.0
        %1692 = vmatpush1.msra.mxu0 0.0
        %1693 = vmatprep.subr.mxu0 0.0
        %1694 = vmatpush1.msra.mxu0 0.0
        %1695 = vmatprep.subr.mxu0 0.0
        %1696 = vmatpush1.msra.mxu0 0.0
        %1697 = vmatprep.subr.mxu0 0.0
        %1698 = vmatpush1.msra.mxu0 0.0
        %1699 = vmatprep.subr.mxu0 0.0
        %1700 = vmatpush1.msra.mxu0 0.0
        %1701 = vmatprep.subr.mxu0 0.0
        %1702 = vmatpush1.msra.mxu0 0.0
        %1703 = vmatprep.subr.mxu0 0.0
        %1704 = vmatpush1.msra.mxu0 0.0
        %1705 = vmatprep.subr.mxu0 0.0
        %1706 = vmatpush1.msra.mxu0 0.0
        %1707 = vmatprep.subr.mxu0 0.0
        %1708 = vmatpush1.msra.mxu0 0.0
        %1709 = vmatprep.subr.mxu0 0.0
        %1710 = vmatpush1.msra.mxu0 0.0
        %1711 = vmatprep.subr.mxu0 0.0
        %1712 = vmatpush1.msra.mxu0 0.0
        %1713 = vmatprep.subr.mxu0 0.0
        %1714 = vmatpush1.msra.mxu0 0.0
        %1715 = vmatprep.subr.mxu0 0.0
        %1716 = vmatpush1.msra.mxu0 0.0
        %1717 = vmatprep.subr.mxu0 0.0
        %1718 = vmatpush1.msra.mxu0 0.0
        %1719 = vmatprep.subr.mxu0 0.0
        %1720 = vmatpush1.msra.mxu0 0.0
        %1721 = vmatprep.subr.mxu0 0.0
        %1722 = vmatpush1.msra.mxu0 0.0
        %1723 = vmatprep.subr.mxu0 0.0
        %1724 = vmatpush1.msra.mxu0 0.0
        %1725 = vmatprep.subr.mxu0 0.0
        %1726 = vmatpush1.msra.mxu0 0.0
        %1727 = vmatprep.mubr.f32.mxu0 0.0
        %1728 = vmatmul.mubr.f32.gmra.mrb[0].mxu0 %v1448
        %v1729 = vpop.f32.mrb[0].mxu0
        %v1730 = vadd.f32 %v1446, %v1729
        %v1731 = vpop.f32.mrb[0].mxu0
        %1732 = vdwg.mxu0
        %v1740 = vcombine.low %v1517, %v1519
        %v1741 = vcombine.low %v1588, %v1590
        %v1742 = vcombine.low %v1659, %v1661
        %v1744 = vunpack.c.l.s4 1966171168
        %v1745 = vunpack.c.0.s8 %v1744
        %v1746 = vlaneseq
        %v1747 = vshrl.u32 %v1746, 7
        %v1748 = vsub.s32 %v1745, %v1747
        %v1749 = vrot.slane %v1740, %v1748
        %v1751 = vunpack.c.l.s4 1966171168
        %v1752 = vunpack.c.0.s8 %v1751
        %v1753 = vlaneseq
        %v1754 = vshrl.u32 %v1753, 7
        %v1755 = vsub.s32 %v1752, %v1754
        %v1756 = vrot.slane %v1741, %v1755
        %v1758 = vunpack.c.l.s4 1966171168
        %v1759 = vunpack.c.0.s8 %v1758
        %v1760 = vlaneseq
        %v1761 = vshrl.u32 %v1760, 7
        %v1762 = vsub.s32 %v1759, %v1761
        %v1763 = vrot.slane %v1742, %v1762
        %v1765 = vunpack.c.l.s4 1966171168
        %v1766 = vunpack.c.0.s8 %v1765
        %v1767 = vlaneseq
        %v1768 = vshrl.u32 %v1767, 7
        %v1769 = vsub.s32 %v1766, %v1768
        %v1770 = vrot.slane %v1730, %v1769
        %v1771 = vcombine.low %v1749, %v1756
        %v1772 = vcombine.low %v1763, %v1770
        %v1774 = vunpack.c.l.s4 1966171168
        %v1775 = vunpack.c.0.s8 %v1774
        %v1776 = vlaneseq
        %v1777 = vshrl.u32 %v1776, 7
        %v1778 = vsub.s32 %v1775, %v1777
        %v1779 = vrot.slane %v1771, %v1778
        %v1781 = vunpack.c.l.s4 1966171168
        %v1782 = vunpack.c.0.s8 %v1781
        %v1783 = vlaneseq
        %v1784 = vshrl.u32 %v1783, 7
        %v1785 = vsub.s32 %v1782, %v1784
        %v1786 = vrot.slane %v1772, %v1785
        %v1787 = vcombine.low %v1779, %v1786
        %v1789 = vlaneseq
        %vm1790 = vcmp.ge.s32.totalorder %v1789, 0
        %vm1791 = vcmp.lt.s32.totalorder %v1789, 896
        %vm1792 = vmand %vm1790, %vm1791
        %1793 = vst.msk [vmem:[%s286] sm:$0x7f] %vm1792, %v1787
        %s1794 = sand.u32 %s183, 1
        %s1795 = scalar_lea.sflag [#allocation4], %s1794
        %s1796 = sand.u32 %s183, 1
        %s1797 = smul.addr %s1796, 7
        %s1798 = scalar_lea.vmem [#allocation3], %s1797
        // Predicated region
        $region49: #{tpu_custom_call.1} parent=47 // pred_check
          %p1799 = pneg %p193
        $region50: #{tpu_custom_call.1} parent=47 // pred_check_branch
          %1801 = sbr.rel (%p1799) target = $region52
        $region51: #{tpu_custom_call.1} parent=47 // pred_region
          %s1802 = smul.u32 7, %s23
          %s1803 = ssub.s32 8, %s1802
          %p1804 = scmp.lt.s32.totalorder %s1803, 7
          %s1805 = scalar_select %p1804, %s1803, 7
          %s1806 = smul.u32 16, %s1805
          %s1808 = ssub.s32 112, %s1806
          %1809 = vsyncadd %s1795, %s1808
          %p1810 = scmp.ne.s32.totalorder 0, %s1806
          %s1811 = smul.addr %s1802, 16
          %s1812 = scalar_lea.hbm %s7, %s1811
          %s1813 = sshll.u32 %s1805, 4
          %s1814 = sshll.u32 %s1798, 4
          %s1815 = int_to_ptr.vmem [resolvable:$true] %s1814
          %1817 = dma.vmem_to_hbm [thread:$0]  (%p1810), %s1815, %s1813, %s1812, %s1795
        $region52: #{tpu_custom_call.1} parent=47 // pred_fallthru
          _
      $region48: #{tpu_custom_call.1} parent=5 // pred_fallthru
        _
      %p1818 = scmp.le.s32.totalorder 2, %s18
      // Predicated region
      $region53: #{tpu_custom_call.1} parent=5 // pred_check
        %p1819 = pneg %p1818
      $region54: #{tpu_custom_call.1} parent=5 // pred_check_branch
        %1821 = sbr.rel (%p1819) target = $region56
      $region55: #{tpu_custom_call.1} parent=5 // pred_region
        %s1822 = ssub.s32 %s18, 2
        // Predicated region
        $region57: #{tpu_custom_call.1} parent=55 // pred_check
          %p1823 = pneg %p199
        $region58: #{tpu_custom_call.1} parent=55 // pred_check_branch
          %1825 = sbr.rel (%p1823) target = $region60
        $region59: #{tpu_custom_call.1} parent=55 // pred_region
          %s1826 = sand.u32 %s184, 1
          %s1827 = scalar_lea.sflag [#allocation4], %s1826
          %s1828 = sand.u32 %s184, 1
          %s1829 = smul.addr %s1828, 7
          %s1830 = scalar_lea.vmem [#allocation3], %s1829
          %1831 = dma.done %s1827, 112
        $region60: #{tpu_custom_call.1} parent=55 // pred_fallthru
          _
      $region56: #{tpu_custom_call.1} parent=5 // pred_fallthru
        _
    $region6: #{tpu_custom_call.1} parent=1 // loop_footer
      %s22 = sadd.s32 1, %s18
    $region7: #{tpu_custom_call.1} parent=1 // loop_footer_branch
      %17 = sbr.rel target = $region3
    $region8: #{tpu_custom_call.1} parent=1 // loop_exit
      _
    %1832 = vsyncpa [#allocation4], 1
    %s1833 = scalar_lea.sflag [#allocation4], 1
    %1834 = vsyncpa %s1833, 1

</llo_original>
